<compile_context>
chip_gen: v6e
topology: v6e:2x2x1
jax: 0.10.0
libtpu: 0.0.40
codegen_flags: <defaults>
</compile_context>

<pallas_src>
import functools

import jax
import jax.numpy as jnp
from jax.experimental import pallas as pl
from jax.experimental.pallas import tpu as pltpu

_LANE = 128


def _round_up(n, m):
    return ((n + m - 1) // m) * m


# ----------------------------------------------------------------------------
# Fused, streamed KipfNet kernel
# ----------------------------------------------------------------------------
def _kipfnet_kernel(l_ref, x_ref, w1_ref, b1_ref, w2_ref, b2_ref, o_ref,
                    t_ref, hacc_ref, hbuf_ref, *, k1, f_in, h1p, tm, np_):
    """One grid step.  grid = (steps, row_tiles), steps = (K1-1)+(K_mix-1), both
    sequential ('arbitrary').

      l_ref    (tm, Np)     bf16  streamed row tile of the rescaled Laplacian
      x_ref    (Np, F)      bf16  node features (resident)
      w1_ref   (K1*F, H1p)  bf16  layer-1 weights, per-order rows stacked
      b1_ref   (1, H1p)     f32
      w2_ref   (2*H1p, Cp)  bf16  mixing-layer weights (K_mix = 2)
      b2_ref   (1, Cp)      f32
      o_ref    (Np, Cp)     f32   resident output (written at the last step only)
      t_ref    (2*Np, F)    bf16  Chebyshev ping-pong carries (T_{j-1}, T_{j-2})
      hacc_ref (Np, H1p)    f32   layer-1 accumulator
      hbuf_ref (Np, H1p)    bf16  post-ReLU hidden activation
    """
    s = pl.program_id(0)
    i = pl.program_id(1)
    row0 = pl.multiple_of(i * tm, tm)
    l_tile = l_ref[...]                                   # (tm, Np) bf16
    n_l1 = k1 - 1                                         # layer-1 L passes

    @pl.when(s == 0)
    def _init():
        # T_0 = x, T_1 = L x ; h_acc = T_0 W_0 + T_1 W_1 + b1.
        x_tile = x_ref[pl.ds(row0, tm), :]
        t1 = jnp.dot(l_tile, x_ref[...], preferred_element_type=jnp.float32)
        t1_bf = t1.astype(jnp.bfloat16)
        acc = jnp.dot(x_tile, w1_ref[0:f_in, :], preferred_element_type=jnp.float32)
        acc = acc + jnp.dot(t1_bf, w1_ref[f_in:2 * f_in, :],
                            preferred_element_type=jnp.float32)
        acc = acc + b1_ref[...]
        hacc_ref[pl.ds(row0, tm), :] = acc
        t_ref[pl.ds(row0, tm), :] = x_tile                # slot 0 <- T_0
        t_ref[pl.ds(np_ + row0, tm), :] = t1_bf           # slot 1 <- T_1

    @pl.when(jnp.logical_and(s >= 1, s < n_l1))
    def _recurse():
        # Computing T_j, j = s + 1 >= 2:  T_j = 2 L T_{j-1} - T_{j-2}.
        # T_{j-1} lives in slot s%2; T_{j-2} lives in the other slot and is
        # overwritten in place (its rows are only needed by this row tile).
        j = s + 1
        p_cur = s % 2
        cur0 = pl.multiple_of(p_cur * np_, _LANE)
        new0 = pl.multiple_of((1 - p_cur) * np_ + row0, _LANE)
        t_prev_full = t_ref[pl.ds(cur0, np_), :]                      # (Np, F)
        t_old = t_ref[pl.ds(new0, tm), :].astype(jnp.float32)         # T_{j-2}[tile]
        t_new = (2.0 * jnp.dot(l_tile, t_prev_full,
                               preferred_element_type=jnp.float32) - t_old)
        t_new_bf = t_new.astype(jnp.bfloat16)
        t_ref[pl.ds(new0, tm), :] = t_new_bf
        w_off = pl.multiple_of(j * f_in, f_in)
        w_j = w1_ref[pl.ds(w_off, f_in), :]                           # (F, H1p)
        hacc_ref[pl.ds(row0, tm), :] = (
            hacc_ref[pl.ds(row0, tm), :]
            + jnp.dot(t_new_bf, w_j, preferred_element_type=jnp.float32))

    @pl.when(s == n_l1 - 1)
    def _finalize_hidden():
        # h = ReLU(acc); dropout is inference-mode identity.
        # TODO(synk): training-mode (stochastic) dropout not implemented.
        h_tile = jnp.maximum(hacc_ref[pl.ds(row0, tm), :], 0.0)
        hbuf_ref[pl.ds(row0, tm), :] = h_tile.astype(jnp.bfloat16)

    @pl.when(s == n_l1)
    def _mix():
        # conv_mix with K_mix = 2:  y = h W2_0 + (L h) W2_1 + b2.
        h_tile = hbuf_ref[pl.ds(row0, tm), :]
        t2 = jnp.dot(l_tile, hbuf_ref[...], preferred_element_type=jnp.float32)
        y = jnp.dot(h_tile, w2_ref[0:h1p, :], preferred_element_type=jnp.float32)
        y = y + jnp.dot(t2.astype(jnp.bfloat16), w2_ref[h1p:2 * h1p, :],
                        preferred_element_type=jnp.float32)
        y = y + b2_ref[...]
        o_ref[pl.ds(row0, tm), :] = y.astype(o_ref.dtype)


def _vmem_bytes_estimate(np_, tm, f_in, h1p, cp, k1, k2):
    f_l = max(f_in, _LANE)                      # lane padding of narrow buffers
    byt = 2 * tm * np_ * 2                      # double-buffered L_hat row tile (bf16)
    byt += np_ * f_l * 2                        # resident x (bf16)
    byt += (k1 * f_in * h1p + k2 * h1p * cp) * 2 + (h1p + cp) * 4   # weights/biases
    byt += np_ * cp * 4                         # resident output (f32)
    byt += 2 * np_ * f_l * 2                    # Chebyshev ping-pong carries (bf16)
    byt += np_ * h1p * (4 + 2)                  # h accumulator (f32) + h (bf16)
    return byt


def _kipfnet_pallas(l_hat, x, w1p, b1p, w2p, b2p, *, k1, k2, f_in, h1p, cp, row_tile):
    np_ = l_hat.shape[0]
    assert k1 >= 2 and k2 == 2, "layer-2 specialized to KipfNet default K_mix=2"
    assert np_ % _LANE == 0 and np_ % row_tile == 0 and row_tile % _LANE == 0
    assert x.shape == (np_, f_in) and f_in % 16 == 0
    assert w1p.shape == (k1 * f_in, h1p) and w2p.shape == (k2 * h1p, cp)
    n_tiles = np_ // row_tile
    steps = (k1 - 1) + (k2 - 1)

    kernel = functools.partial(_kipfnet_kernel, k1=k1, f_in=f_in, h1p=h1p,
                               tm=row_tile, np_=np_)
    vmem_need = _vmem_bytes_estimate(np_, row_tile, f_in, h1p, cp, k1, k2)
    # 2x headroom, floored at 32 MiB, capped below v7x's 64 MiB physical VMEM so a
    # single config stays loadable on v5e/v6e/v7x.  On v6e with very large graphs
    # raise the cap and use 256-512 row tiles instead.
    vmem_limit = int(min(max(2 * vmem_need, 32 * 2 ** 20), 60 * 2 ** 20))

    grid_spec = pltpu.PrefetchScalarGridSpec(
        num_scalar_prefetch=0,
        grid=(steps, n_tiles),
        in_specs=[
            pl.BlockSpec((row_tile, np_), lambda s, i: (i, 0)),     # L_hat row tile
            pl.BlockSpec((np_, f_in), lambda s, i: (0, 0)),         # x (resident)
            pl.BlockSpec((k1 * f_in, h1p), lambda s, i: (0, 0)),    # W1
            pl.BlockSpec((1, h1p), lambda s, i: (0, 0)),            # b1
            pl.BlockSpec((k2 * h1p, cp), lambda s, i: (0, 0)),      # W2
            pl.BlockSpec((1, cp), lambda s, i: (0, 0)),             # b2
        ],
        out_specs=pl.BlockSpec((np_, cp), lambda s, i: (0, 0)),     # resident output
        scratch_shapes=[
            pltpu.VMEM((2 * np_, f_in), jnp.bfloat16),   # Chebyshev ping-pong carries
            pltpu.VMEM((np_, h1p), jnp.float32),         # layer-1 accumulator
            pltpu.VMEM((np_, h1p), jnp.bfloat16),        # post-ReLU hidden (bf16)
        ],
    )
    # Both axes 'arbitrary': the step axis is a true sequential dependency and each
    # row tile reads carries written by *all* tiles of the previous step.
    return pl.pallas_call(
        kernel,
        out_shape=jax.ShapeDtypeStruct((np_, cp), jnp.float32),
        grid_spec=grid_spec,
        compiler_params=pltpu.CompilerParams(
            dimension_semantics=("arbitrary", "arbitrary"),
            vmem_limit_bytes=vmem_limit),
    )(l_hat, x, w1p, b1p, w2p, b2p)


_kipfnet_pallas_jit = jax.jit(
    _kipfnet_pallas,
    static_argnames=("k1", "k2", "f_in", "h1p", "cp", "row_tile"))


# ----------------------------------------------------------------------------
# Host-side one-time packing / graph preprocessing
# ----------------------------------------------------------------------------
def prepare_params(w1, b1, w_mix, b_mix):
    """Stack per-order weights along rows and zero-pad hidden/class dims to 128
    lanes (feature dim to a multiple of 16 for bf16 sublane packing).  All padding
    is zeros, so padded hidden lanes stay exactly 0 through bias + ReLU and cannot
    leak into real output columns (W2's padded input rows are zero too)."""
    k1, f_in, h1 = w1.shape
    k2, h1_w, c = w_mix.shape
    assert h1_w == h1
    fp = _round_up(f_in, 16)
    h1p = _round_up(h1, _LANE)
    cp = _round_up(c, _LANE)
    w1p = jnp.pad(w1.astype(jnp.float32),
                  ((0, 0), (0, fp - f_in), (0, h1p - h1))).reshape(k1 * fp, h1p)
    b1p = jnp.pad(b1.astype(jnp.float32).reshape(1, h1), ((0, 0), (0, h1p - h1)))
    w2p = jnp.pad(w_mix.astype(jnp.float32),
                  ((0, 0), (0, h1p - h1), (0, cp - c))).reshape(k2 * h1p, cp)
    b2p = jnp.pad(b_mix.astype(jnp.float32).reshape(1, c), ((0, 0), (0, cp - c)))
    return dict(w1=w1p.astype(jnp.bfloat16), b1=b1p,
                w2=w2p.astype(jnp.bfloat16), b2=b2p,
                k1=int(k1), k2=int(k2), f_in=int(fp), h1p=int(h1p), cp=int(cp),
                num_features=int(f_in), num_classes=int(c))


def build_l_hat_dense(edge_index, num_nodes):
    """PyG ChebConv (normalization='sym', default lambda_max=2.0) rescaled Laplacian:
       L_hat = 2/lambda_max*(I - D^-1/2 A D^-1/2) - I = -D^-1/2 A D^-1/2."""
    src, dst = edge_index[0], edge_index[1]
    adj = jnp.zeros((num_nodes, num_nodes), jnp.float32).at[src, dst].add(1.0)
    deg = adj.sum(axis=1)
    dis = jnp.where(deg > 0.0, jax.lax.rsqrt(jnp.maximum(deg, 1e-12)), 0.0)
    return -(dis[:, None] * adj * dis[None, :])


def build_l_hat(edge_index, num_nodes, padded_nodes):
    """Padded bf16 L_hat for the kernel.  For a static graph build ONCE and cache."""
    pad = padded_nodes - num_nodes
    l_hat = jnp.pad(build_l_hat_dense(edge_index, num_nodes), ((0, pad), (0, pad)))
    return l_hat.astype(jnp.bfloat16)


def pad_features(x, padded_nodes, padded_features):
    n, f = x.shape
    return jnp.pad(x.astype(jnp.float32),
                   ((0, padded_nodes - n), (0, padded_features - f))).astype(jnp.bfloat16)


def kipfnet_forward(x_pad, l_hat_pad, packed, num_nodes, row_tile=128):
    out = _kipfnet_pallas_jit(l_hat_pad, x_pad, packed["w1"], packed["b1"],
                              packed["w2"], packed["b2"],
                              k1=packed["k1"], k2=packed["k2"], f_in=packed["f_in"],
                              h1p=packed["h1p"], cp=packed["cp"], row_tile=row_tile)
    return out[:num_nodes, :packed["num_classes"]]


# ----------------------------------------------------------------------------
# Pure-JAX references
# ----------------------------------------------------------------------------
def _cheb_conv_ref(l_hat, x, weight, bias, precision):
    k = weight.shape[0]
    t_prev = x
    out = jnp.dot(t_prev, weight[0], precision=precision)
    if k > 1:
        t_cur = jnp.dot(l_hat, t_prev, precision=precision)
        out = out + jnp.dot(t_cur, weight[1], precision=precision)
        for i in range(2, k):
            t_next = 2.0 * jnp.dot(l_hat, t_cur, precision=precision) - t_prev
            out = out + jnp.dot(t_next, weight[i], precision=precision)
            t_prev, t_cur = t_cur, t_next
    return out + bias[None, :]


def kipfnet_ref_f32(x, l_hat, params):
    hp = jax.lax.Precision.HIGHEST
    h = jnp.maximum(_cheb_conv_ref(l_hat, x, params["w1"], params["b1"], hp), 0.0)
    return _cheb_conv_ref(l_hat, h, params["w_mix"], params["b_mix"], hp)


def _cheb_conv_ref_bf16(l_bf, x_bf, w_bf, bias):
    # Mirrors the kernel's dtype policy: bf16 MXU operands / carries, f32 accumulate.
    k = w_bf.shape[0]
    t_prev = x_bf
    out = jnp.dot(t_prev, w_bf[0], preferred_element_type=jnp.float32)
    if k > 1:
        t_cur = jnp.dot(l_bf, t_prev,
                        preferred_element_type=jnp.float32).astype(jnp.bfloat16)
        out = out + jnp.dot(t_cur, w_bf[1], preferred_element_type=jnp.float32)
        for i in range(2, k):
            t_new = (2.0 * jnp.dot(l_bf, t_cur, preferred_element_type=jnp.float32)
                     - t_prev.astype(jnp.float32)).astype(jnp.bfloat16)
            out = out + jnp.dot(t_new, w_bf[i], preferred_element_type=jnp.float32)
            t_prev, t_cur = t_cur, t_new
    return out + bias[None, :]


def kipfnet_ref_matched(x, l_hat, params):
    l_bf = l_hat.astype(jnp.bfloat16)
    x_bf = x.astype(jnp.bfloat16)
    w1 = params["w1"].astype(jnp.bfloat16)
    w2 = params["w_mix"].astype(jnp.bfloat16)
    h = jnp.maximum(_cheb_conv_ref_bf16(l_bf, x_bf, w1, params["b1"]), 0.0)
    return _cheb_conv_ref_bf16(l_bf, h.astype(jnp.bfloat16), w2, params["b_mix"])


def glorot(key, shape):
    fan_in, fan_out = shape[-2], shape[-1]
    limit = jnp.sqrt(6.0 / (fan_in + fan_out))
    return jax.random.uniform(key, shape, jnp.float32, -limit, limit)


if __name__ == "__main__":
    N = 64              # real number of graph nodes
    NP = 256            # padded node count: 2 row tiles of 128 so the streamed
                        # (gridded) path is exercised even at demo size
    NUM_FEATURES = 16
    NH1 = 32
    NUM_CLASSES = 8
    K = 8
    K_MIX = 2

    key = jax.random.PRNGKey(0)
    k_x, k_e, k_w1, k_b1, k_w2, k_b2 = jax.random.split(key, 6)

    x = jax.random.normal(k_x, (N, NUM_FEATURES), jnp.float32)

    # Synthetic undirected graph: ring + random chords (deterministic)
    ring_src = jnp.arange(N, dtype=jnp.int32)
    ring_dst = (ring_src + 1) % N
    rnd = jax.random.randint(k_e, (2, 32), 0, N, dtype=jnp.int32)
    src = jnp.concatenate([ring_src, ring_dst, rnd[0], rnd[1]])
    dst = jnp.concatenate([ring_dst, ring_src, rnd[1], rnd[0]])
    edge_index = jnp.stack([src, dst])                    # (2, 192)

    # ChebConv params: weight (K, F_in, F_out), bias (F_out,)
    params = {
        "w1": glorot(k_w1, (K, NUM_FEATURES, NH1)),
        "b1": 0.01 * jax.random.normal(k_b1, (NH1,), jnp.float32),
        "w_mix": glorot(k_w2, (K_MIX, NH1, NUM_CLASSES)),
        "b_mix": 0.01 * jax.random.normal(k_b2, (NUM_CLASSES,), jnp.float32),
    }
    packed = prepare_params(params["w1"], params["b1"],
                            params["w_mix"], params["b_mix"])

    # Static graph: build L_hat once (cached), not per forward call.
    l_dense = build_l_hat_dense(edge_index, N)            # (N, N) f32 for refs
    l_pad = build_l_hat(edge_index, N, NP)                # (NP, NP) bf16 for kernel
    x_pad = pad_features(x, NP, packed["f_in"])           # (NP, Fp) bf16

    out = kipfnet_forward(x_pad, l_pad, packed, num_nodes=N, row_tile=128)
    out = jax.block_until_ready(out)
    assert out.shape == (N, NUM_CLASSES)
    assert bool(jnp.all(jnp.isfinite(out)))

    # Tight check against a reference that mirrors the kernel's dtype policy
    # (bf16 operands / carries, f32 accumulate): catches real numerical regressions.
    ref_m = kipfnet_ref_matched(x, l_dense, params)
    err_m = float(jnp.max(jnp.abs(out - ref_m)) / (jnp.max(jnp.abs(ref_m)) + 1e-6))
    assert err_m < 2e-3, f"mismatch vs dtype-matched reference: {err_m}"

    # Looser sanity check against the full-f32 reference: bounds the bf16 policy
    # itself (bf16 carries compound ~O(K) rounding over the Chebyshev recursion).
    ref32 = kipfnet_ref_f32(x, l_dense, params)
    err32 = float(jnp.max(jnp.abs(out - ref32)) / (jnp.max(jnp.abs(ref32)) + 1e-6))
    assert err32 < 8e-2, f"bf16 policy drifted too far from f32 reference: {err32}"

    print("KERNEL_OK")
</pallas_src>

<mosaic_0001>
module attributes {stable_mosaic.version = 11 : i64} {
  func.func @_kipfnet_kernel(%arg0: i32, %arg1: i32, %arg2: memref<128x256xbf16, #tpu.memory_space<vmem>>, %arg3: memref<256x16xbf16, #tpu.memory_space<vmem>>, %arg4: memref<128x128xbf16, #tpu.memory_space<vmem>>, %arg5: memref<1x128xf32, #tpu.memory_space<vmem>>, %arg6: memref<256x128xbf16, #tpu.memory_space<vmem>>, %arg7: memref<1x128xf32, #tpu.memory_space<vmem>>, %arg8: memref<256x128xf32, #tpu.memory_space<vmem>>, %arg9: memref<512x16xbf16, #tpu.memory_space<vmem>>, %arg10: memref<256x128xf32, #tpu.memory_space<vmem>>, %arg11: memref<256x128xbf16, #tpu.memory_space<vmem>>) attributes {dimension_semantics = [#tpu.dimension_semantics<arbitrary>, #tpu.dimension_semantics<arbitrary>], iteration_bounds = array<i64: 8, 2>, scalar_prefetch = 0 : i64, scratch_operands = 3 : i64, tpu.core_type = #tpu.core_type<tc>, window_params = [{transform_indices = @transform_0, window_bounds = array<i64: 128, 256>}, {pipeline_mode = #tpu.pipeline_mode<synchronous>, transform_indices = @transform_1, window_bounds = array<i64: 256, 16>}, {pipeline_mode = #tpu.pipeline_mode<synchronous>, transform_indices = @transform_2, window_bounds = array<i64: 128, 128>}, {pipeline_mode = #tpu.pipeline_mode<synchronous>, transform_indices = @transform_3, window_bounds = array<i64: 1, 128>}, {pipeline_mode = #tpu.pipeline_mode<synchronous>, transform_indices = @transform_4, window_bounds = array<i64: 256, 128>}, {pipeline_mode = #tpu.pipeline_mode<synchronous>, transform_indices = @transform_5, window_bounds = array<i64: 1, 128>}, {pipeline_mode = #tpu.pipeline_mode<synchronous>, transform_indices = @transform_6, window_bounds = array<i64: 256, 128>}]} {
    %c128_i32 = arith.constant 128 : i32
    %0 = arith.muli %arg1, %c128_i32 : i32
    %1 = tpu.assume_multiple %0, 128 : i32
    %c0 = arith.constant 0 : index
    %c0_0 = arith.constant 0 : index
    %2 = vector.load %arg2[%c0, %c0_0] : memref<128x256xbf16, #tpu.memory_space<vmem>>, vector<128x256xbf16>
    %c0_i32 = arith.constant 0 : i32
    %3 = arith.cmpi eq, %arg0, %c0_i32 : i32
    %4 = arith.extui %3 : i1 to i32
    %c0_i32_1 = arith.constant 0 : i32
    %5 = arith.cmpi ne, %4, %c0_i32_1 : i32
    scf.if %5 {
      %17 = arith.index_cast %1 : i32 to index
      %c0_6 = arith.constant 0 : index
      %18 = vector.load %arg3[%17, %c0_6] : memref<256x16xbf16, #tpu.memory_space<vmem>>, vector<128x16xbf16>
      %c0_7 = arith.constant 0 : index
      %c0_8 = arith.constant 0 : index
      %19 = vector.load %arg3[%c0_7, %c0_8] : memref<256x16xbf16, #tpu.memory_space<vmem>>, vector<256x16xbf16>
      %cst = arith.constant dense<0.000000e+00> : vector<128x16xf32>
      %20 = tpu.matmul %2, %19, %cst {dimension_numbers = #tpu.dot_dimension_numbers<[1], [0], [0], [1], [0, 0, 1, 1], [], []>} : vector<128x256xbf16>, vector<256x16xbf16>, vector<128x16xf32> -> vector<128x16xf32>
      %21 = arith.truncf %20 : vector<128x16xf32> to vector<128x16xbf16>
      %c0_9 = arith.constant 0 : index
      %c0_10 = arith.constant 0 : index
      %22 = vector.load %arg4[%c0_9, %c0_10] : memref<128x128xbf16, #tpu.memory_space<vmem>>, vector<16x128xbf16>
      %cst_11 = arith.constant dense<0.000000e+00> : vector<128x128xf32>
      %23 = tpu.matmul %18, %22, %cst_11 {dimension_numbers = #tpu.dot_dimension_numbers<[1], [0], [0], [1], [0, 0, 1, 1], [], []>} : vector<128x16xbf16>, vector<16x128xbf16>, vector<128x128xf32> -> vector<128x128xf32>
      %c16 = arith.constant 16 : index
      %c0_12 = arith.constant 0 : index
      %24 = vector.load %arg4[%c16, %c0_12] : memref<128x128xbf16, #tpu.memory_space<vmem>>, vector<16x128xbf16>
      %cst_13 = arith.constant dense<0.000000e+00> : vector<128x128xf32>
      %25 = tpu.matmul %21, %24, %cst_13 {dimension_numbers = #tpu.dot_dimension_numbers<[1], [0], [0], [1], [0, 0, 1, 1], [], []>} : vector<128x16xbf16>, vector<16x128xbf16>, vector<128x128xf32> -> vector<128x128xf32>
      %26 = arith.addf %23, %25 : vector<128x128xf32>
      %c0_14 = arith.constant 0 : index
      %c0_15 = arith.constant 0 : index
      %27 = vector.load %arg5[%c0_14, %c0_15] : memref<1x128xf32, #tpu.memory_space<vmem>>, vector<1x128xf32>
      %28 = vector.broadcast %27 : vector<1x128xf32> to vector<128x128xf32>
      %29 = arith.addf %26, %28 : vector<128x128xf32>
      %30 = arith.index_cast %1 : i32 to index
      %c0_16 = arith.constant 0 : index
      %31 = vector.load %arg10[%30, %c0_16] : memref<256x128xf32, #tpu.memory_space<vmem>>, vector<128x128xf32>
      tpu.vector_store %arg10[%30, %c0_16], %29 {strides = array<i32>} : memref<256x128xf32, #tpu.memory_space<vmem>>, vector<128x128xf32>,
      %32 = arith.index_cast %1 : i32 to index
      %c0_17 = arith.constant 0 : index
      %33 = vector.load %arg9[%32, %c0_17] : memref<512x16xbf16, #tpu.memory_space<vmem>>, vector<128x16xbf16>
      tpu.vector_store %arg9[%32, %c0_17], %18 {strides = array<i32>} : memref<512x16xbf16, #tpu.memory_space<vmem>>, vector<128x16xbf16>,
      %c256_i32 = arith.constant 256 : i32
      %34 = arith.addi %c256_i32, %1 : i32
      %35 = arith.index_cast %34 : i32 to index
      %c0_18 = arith.constant 0 : index
      %36 = vector.load %arg9[%35, %c0_18] : memref<512x16xbf16, #tpu.memory_space<vmem>>, vector<128x16xbf16>
      tpu.vector_store %arg9[%35, %c0_18], %21 {strides = array<i32>} : memref<512x16xbf16, #tpu.memory_space<vmem>>, vector<128x16xbf16>,
    } else {
    }
    %c1_i32 = arith.constant 1 : i32
    %6 = arith.cmpi sge, %arg0, %c1_i32 : i32
    %c7_i32 = arith.constant 7 : i32
    %7 = arith.cmpi slt, %arg0, %c7_i32 : i32
    %8 = arith.andi %6, %7 : i1
    %9 = arith.extui %8 : i1 to i32
    %c0_i32_2 = arith.constant 0 : i32
    %10 = arith.cmpi ne, %9, %c0_i32_2 : i32
    scf.if %10 {
      %c1_i32_6 = arith.constant 1 : i32
      %17 = arith.addi %arg0, %c1_i32_6 : i32
      %c2_i32 = arith.constant 2 : i32
      %c0_i32_7 = arith.constant 0 : i32
      %18 = arith.cmpi eq, %c2_i32, %c0_i32_7 : i32
      %c1_i32_8 = arith.constant 1 : i32
      %19 = arith.select %18, %c1_i32_8, %c2_i32 : i32
      %20 = arith.remsi %arg0, %19 : i32
      %c0_i32_9 = arith.constant 0 : i32
      %21 = arith.cmpi ne, %20, %c0_i32_9 : i32
      %c0_i32_10 = arith.constant 0 : i32
      %22 = arith.cmpi slt, %20, %c0_i32_10 : i32
      %c0_i32_11 = arith.constant 0 : i32
      %23 = arith.cmpi slt, %19, %c0_i32_11 : i32
      %24 = arith.xori %22, %23 : i1
      %25 = arith.andi %24, %21 : i1
      %26 = arith.addi %20, %19 : i32
      %27 = arith.select %25, %26, %20 : i32
      %c256_i32 = arith.constant 256 : i32
      %28 = arith.muli %27, %c256_i32 : i32
      %29 = tpu.assume_multiple %28, 128 : i32
      %c1_i32_12 = arith.constant 1 : i32
      %30 = arith.subi %c1_i32_12, %27 : i32
      %c256_i32_13 = arith.constant 256 : i32
      %31 = arith.muli %30, %c256_i32_13 : i32
      %32 = arith.addi %31, %1 : i32
      %33 = tpu.assume_multiple %32, 128 : i32
      %34 = arith.index_cast %29 : i32 to index
      %c0_14 = arith.constant 0 : index
      %35 = vector.load %arg9[%34, %c0_14] : memref<512x16xbf16, #tpu.memory_space<vmem>>, vector<256x16xbf16>
      %36 = arith.index_cast %33 : i32 to index
      %c0_15 = arith.constant 0 : index
      %37 = vector.load %arg9[%36, %c0_15] : memref<512x16xbf16, #tpu.memory_space<vmem>>, vector<128x16xbf16>
      %38 = arith.extf %37 : vector<128x16xbf16> to vector<128x16xf32>
      %cst = arith.constant dense<0.000000e+00> : vector<128x16xf32>
      %39 = tpu.matmul %2, %35, %cst {dimension_numbers = #tpu.dot_dimension_numbers<[1], [0], [0], [1], [0, 0, 1, 1], [], []>} : vector<128x256xbf16>, vector<256x16xbf16>, vector<128x16xf32> -> vector<128x16xf32>
      %cst_16 = arith.constant 2.000000e+00 : f32
      %40 = vector.broadcast %cst_16 : f32 to vector<128x16xf32>
      %41 = arith.mulf %40, %39 : vector<128x16xf32>
      %42 = arith.subf %41, %38 : vector<128x16xf32>
      %43 = arith.truncf %42 : vector<128x16xf32> to vector<128x16xbf16>
      %44 = arith.index_cast %33 : i32 to index
      %c0_17 = arith.constant 0 : index
      %45 = vector.load %arg9[%44, %c0_17] : memref<512x16xbf16, #tpu.memory_space<vmem>>, vector<128x16xbf16>
      tpu.vector_store %arg9[%44, %c0_17], %43 {strides = array<i32>} : memref<512x16xbf16, #tpu.memory_space<vmem>>, vector<128x16xbf16>,
      %c16_i32 = arith.constant 16 : i32
      %46 = arith.muli %17, %c16_i32 : i32
      %47 = tpu.assume_multiple %46, 16 : i32
      %48 = arith.index_cast %47 : i32 to index
      %c0_18 = arith.constant 0 : index
      %49 = vector.load %arg4[%48, %c0_18] : memref<128x128xbf16, #tpu.memory_space<vmem>>, vector<16x128xbf16>
      %50 = arith.index_cast %1 : i32 to index
      %c0_19 = arith.constant 0 : index
      %51 = vector.load %arg10[%50, %c0_19] : memref<256x128xf32, #tpu.memory_space<vmem>>, vector<128x128xf32>
      %cst_20 = arith.constant dense<0.000000e+00> : vector<128x128xf32>
      %52 = tpu.matmul %43, %49, %cst_20 {dimension_numbers = #tpu.dot_dimension_numbers<[1], [0], [0], [1], [0, 0, 1, 1], [], []>} : vector<128x16xbf16>, vector<16x128xbf16>, vector<128x128xf32> -> vector<128x128xf32>
      %53 = arith.addf %51, %52 : vector<128x128xf32>
      %54 = arith.index_cast %1 : i32 to index
      %c0_21 = arith.constant 0 : index
      %55 = vector.load %arg10[%54, %c0_21] : memref<256x128xf32, #tpu.memory_space<vmem>>, vector<128x128xf32>
      tpu.vector_store %arg10[%54, %c0_21], %53 {strides = array<i32>} : memref<256x128xf32, #tpu.memory_space<vmem>>, vector<128x128xf32>,
    } else {
    }
    %c6_i32 = arith.constant 6 : i32
    %11 = arith.cmpi eq, %arg0, %c6_i32 : i32
    %12 = arith.extui %11 : i1 to i32
    %c0_i32_3 = arith.constant 0 : i32
    %13 = arith.cmpi ne, %12, %c0_i32_3 : i32
    scf.if %13 {
      %17 = arith.index_cast %1 : i32 to index
      %c0_6 = arith.constant 0 : index
      %18 = vector.load %arg10[%17, %c0_6] : memref<256x128xf32, #tpu.memory_space<vmem>>, vector<128x128xf32>
      %cst = arith.constant 0.000000e+00 : f32
      %19 = vector.broadcast %cst : f32 to vector<128x128xf32>
      %20 = arith.maximumf %18, %19 : vector<128x128xf32>
      %21 = arith.truncf %20 : vector<128x128xf32> to vector<128x128xbf16>
      %22 = arith.index_cast %1 : i32 to index
      %c0_7 = arith.constant 0 : index
      %23 = vector.load %arg11[%22, %c0_7] : memref<256x128xbf16, #tpu.memory_space<vmem>>, vector<128x128xbf16>
      tpu.vector_store %arg11[%22, %c0_7], %21 {strides = array<i32>} : memref<256x128xbf16, #tpu.memory_space<vmem>>, vector<128x128xbf16>,
    } else {
    }
    %c7_i32_4 = arith.constant 7 : i32
    %14 = arith.cmpi eq, %arg0, %c7_i32_4 : i32
    %15 = arith.extui %14 : i1 to i32
    %c0_i32_5 = arith.constant 0 : i32
    %16 = arith.cmpi ne, %15, %c0_i32_5 : i32
    scf.if %16 {
      %17 = arith.index_cast %1 : i32 to index
      %c0_6 = arith.constant 0 : index
      %18 = vector.load %arg11[%17, %c0_6] : memref<256x128xbf16, #tpu.memory_space<vmem>>, vector<128x128xbf16>
      %c0_7 = arith.constant 0 : index
      %c0_8 = arith.constant 0 : index
      %19 = vector.load %arg11[%c0_7, %c0_8] : memref<256x128xbf16, #tpu.memory_space<vmem>>, vector<256x128xbf16>
      %cst = arith.constant dense<0.000000e+00> : vector<128x128xf32>
      %20 = tpu.matmul %2, %19, %cst {dimension_numbers = #tpu.dot_dimension_numbers<[1], [0], [0], [1], [0, 0, 1, 1], [], []>} : vector<128x256xbf16>, vector<256x128xbf16>, vector<128x128xf32> -> vector<128x128xf32>
      %c0_9 = arith.constant 0 : index
      %c0_10 = arith.constant 0 : index
      %21 = vector.load %arg6[%c0_9, %c0_10] : memref<256x128xbf16, #tpu.memory_space<vmem>>, vector<128x128xbf16>
      %cst_11 = arith.constant dense<0.000000e+00> : vector<128x128xf32>
      %22 = tpu.matmul %18, %21, %cst_11 {dimension_numbers = #tpu.dot_dimension_numbers<[1], [0], [0], [1], [0, 0, 1, 1], [], []>} : vector<128x128xbf16>, vector<128x128xbf16>, vector<128x128xf32> -> vector<128x128xf32>
      %23 = arith.truncf %20 : vector<128x128xf32> to vector<128x128xbf16>
      %c128 = arith.constant 128 : index
      %c0_12 = arith.constant 0 : index
      %24 = vector.load %arg6[%c128, %c0_12] : memref<256x128xbf16, #tpu.memory_space<vmem>>, vector<128x128xbf16>
      %cst_13 = arith.constant dense<0.000000e+00> : vector<128x128xf32>
      %25 = tpu.matmul %23, %24, %cst_13 {dimension_numbers = #tpu.dot_dimension_numbers<[1], [0], [0], [1], [0, 0, 1, 1], [], []>} : vector<128x128xbf16>, vector<128x128xbf16>, vector<128x128xf32> -> vector<128x128xf32>
      %26 = arith.addf %22, %25 : vector<128x128xf32>
      %c0_14 = arith.constant 0 : index
      %c0_15 = arith.constant 0 : index
      %27 = vector.load %arg7[%c0_14, %c0_15] : memref<1x128xf32, #tpu.memory_space<vmem>>, vector<1x128xf32>
      %28 = vector.broadcast %27 : vector<1x128xf32> to vector<128x128xf32>
      %29 = arith.addf %26, %28 : vector<128x128xf32>
      %30 = arith.index_cast %1 : i32 to index
      %c0_16 = arith.constant 0 : index
      %31 = vector.load %arg8[%30, %c0_16] : memref<256x128xf32, #tpu.memory_space<vmem>>, vector<128x128xf32>
      tpu.vector_store %arg8[%30, %c0_16], %29 {strides = array<i32>} : memref<256x128xf32, #tpu.memory_space<vmem>>, vector<128x128xf32>,
    } else {
    }
    return
  }
  func.func @transform_0(%arg0: i32, %arg1: i32) -> (i32, i32) {
    %c0_i32 = arith.constant 0 : i32
    %c0_i32_0 = arith.constant 0 : i32
    return %arg1, %c0_i32 : i32, i32
  }
  func.func @transform_1(%arg0: i32, %arg1: i32) -> (i32, i32) {
    %c0_i32 = arith.constant 0 : i32
    %c0_i32_0 = arith.constant 0 : i32
    %c0_i32_1 = arith.constant 0 : i32
    return %c0_i32, %c0_i32_0 : i32, i32
  }
  func.func @transform_2(%arg0: i32, %arg1: i32) -> (i32, i32) {
    %c0_i32 = arith.constant 0 : i32
    %c0_i32_0 = arith.constant 0 : i32
    %c0_i32_1 = arith.constant 0 : i32
    return %c0_i32, %c0_i32_0 : i32, i32
  }
  func.func @transform_3(%arg0: i32, %arg1: i32) -> (i32, i32) {
    %c0_i32 = arith.constant 0 : i32
    %c0_i32_0 = arith.constant 0 : i32
    %c0_i32_1 = arith.constant 0 : i32
    return %c0_i32, %c0_i32_0 : i32, i32
  }
  func.func @transform_4(%arg0: i32, %arg1: i32) -> (i32, i32) {
    %c0_i32 = arith.constant 0 : i32
    %c0_i32_0 = arith.constant 0 : i32
    %c0_i32_1 = arith.constant 0 : i32
    return %c0_i32, %c0_i32_0 : i32, i32
  }
  func.func @transform_5(%arg0: i32, %arg1: i32) -> (i32, i32) {
    %c0_i32 = arith.constant 0 : i32
    %c0_i32_0 = arith.constant 0 : i32
    %c0_i32_1 = arith.constant 0 : i32
    return %c0_i32, %c0_i32_0 : i32, i32
  }
  func.func @transform_6(%arg0: i32, %arg1: i32) -> (i32, i32) {
    %c0_i32 = arith.constant 0 : i32
    %c0_i32_0 = arith.constant 0 : i32
    %c0_i32_1 = arith.constant 0 : i32
    return %c0_i32, %c0_i32_0 : i32, i32
  }
}

</mosaic_0001>

<llo_original>
// kernel: _kipfnet_pallas.1
$region0: #{_kipfnet_pallas.1}
  #allocation0 [shape = 'u32[]', space=smem, size = 0x4, offset = 0x4, fixed_abs, tag = 'smem constant byte address 0x4 - core index']
  #allocation1 [shape = 'u32[144,128]{1,0:T(1,128)}', space=vmem, size = 0x12000, scoped, tag = 'internal scratch']
  #allocation2 [shape = 'bf16[512,16]{1,0:T(8,128)(2,1)}', space=vmem, size = 0x20000, scoped, tag = 'scratch operand']
  #allocation3 [shape = 'f32[256,128]{1,0:T(8,128)}', space=vmem, size = 0x20000, scoped, tag = 'scratch operand']
  #allocation4 [shape = 'bf16[256,128]{1,0:T(8,128)(2,1)}', space=vmem, size = 0x10000, scoped, tag = 'scratch operand']
  %s0 = inlined_call_operand.hbm [shape: bf16[256,256], index: 0, kind: input, shape index: {}]
  %s1 = inlined_call_operand.vmem [shape: bf16[256,16], index: 1, kind: input, shape index: {}]
  %s2 = inlined_call_operand.hbm [shape: bf16[128,128], index: 2, kind: input, shape index: {}]
  %s3 = inlined_call_operand.vmem [shape: f32[1,128], index: 3, kind: input, shape index: {}]
  %s4 = inlined_call_operand.vmem [shape: bf16[256,128], index: 4, kind: input, shape index: {}]
  %s5 = inlined_call_operand.vmem [shape: f32[1,128], index: 5, kind: input, shape index: {}]
  %s6 = inlined_call_operand.hbm [shape: f32[256,128], index: 6, kind: output, shape index: {}]
  %s7 = sld [smem:[#allocation0]]
  $region81: #{_kipfnet_pallas.1} parent=0
    _
  %s9 = ssub.s32 1, %s7
  %s10 = scalar_select 0, %s9, %s7
  $region1: #{_kipfnet_pallas.1} parent=0
    #allocation5 [shape = 'u8[131072]{0}', space=vmem, size = 0x20000, scoped, tag = 'input window, operand 0']
    #allocation6 [shape = 's32[2]{0}', space=sflag, size = 0x8, scoped, tag = 'scoped memory for _kipfnet_pallas.1']
    #allocation7 [shape = 's32[2]{0}', space=sflag, size = 0x8, scoped, tag = 'scoped memory for _kipfnet_pallas.1']
    #allocation8 [shape = 'u8[32768]{0}', space=vmem, size = 0x8000, scoped, tag = 'input window, operand 2, single buffered']
    #allocation9 [shape = 's32[1]{0}', space=sflag, size = 0x4, scoped, tag = 'scoped memory for _kipfnet_pallas.1']
    #allocation10 [shape = 'u8[131072]{0}', space=vmem, size = 0x20000, scoped, tag = 'output window, operand 0, single buffered']
    %11 = vsyncpa [#allocation6], 0
    %s12 = scalar_lea.sflag [#allocation6], 1
    %13 = vsyncpa %s12, 0
    %14 = vsyncpa [#allocation9], 0
    %15 = vsyncpa [#allocation7], 0
    loop: start=0, step=1, limit=18
    $region2: #{_kipfnet_pallas.1} parent=1 // loop_pre_header
      _
    $region3: #{_kipfnet_pallas.1} parent=1 // loop_header
      %s17 = sphi 0, %s21
      %p18 = scmp.ge.s32.totalorder %s17, 18
      %s24 = sphi 0, %s36
      %s25 = sphi 0, %s32
      %s26 = sphi 0, %s24
      %s27 = sphi 0, %s25
      %s28 = sphi 0, %s26
      %s29 = sphi 0, %s27
      %s39 = sphi 0, %s41
      %s42 = sphi 0, %s39
      %s43 = sphi 0, %s42
      %s59 = sphi 0, %s43
      %s63 = sphi 0, %s63
      %s65 = sphi 0, %s63
      %s66 = sphi 0, %s65
      %s80 = sphi 0, %s66
      %s84 = sphi 0, %s84
      %s86 = sphi 0, %s84
      %s87 = sphi 0, %s86
      %s101 = sphi 0, %s87
      %s105 = sphi 0, %s105
      %s107 = sphi 0, %s105
      %s108 = sphi 0, %s107
      %s122 = sphi 0, %s108
      %s126 = sphi 0, %s126
      %s128 = sphi 0, %s126
      %s129 = sphi 0, %s128
      %s143 = sphi 0, %s129
      %s147 = sphi 0, %s147
      %s149 = sphi 0, %s147
      %s150 = sphi 0, %s149
      %s164 = sphi 0, %s150
      %s168 = sphi 0, %s168
      %s170 = sphi 0, %s168
      %s171 = sphi 0, %s170
      %s185 = sphi 0, %s171
    $region4: #{_kipfnet_pallas.1} parent=1 // loop_header_branch
      %20 = sbr.rel (%p18) target = $region8
    $region5: #{_kipfnet_pallas.1} parent=1 // loop_body
      %s22 = ssub.s32 %s17, 1
      %s23 = ssub.s32 %s17, 2
      %s30 = sadd.s32 1, %s25
      %p31 = scmp.ge.s32.totalorder %s30, 2
      %s32 = scalar_select %p31, 0, %s30
      %s33 = sadd.s32 1, %s24
      %s34 = scalar_select %p31, %s33, %s24
      %p35 = scmp.ge.s32.totalorder %s34, 8
      %s36 = scalar_select %p35, 0, %s34
      %s37 = ssub.s32 %s25, %s32
      %p38 = scmp.eq.s32.totalorder %s37, 0
      %s40 = sadd.s32 %s39, 1
      %s41 = scalar_select %p38, %s39, %s40
      %p44 = pneg %p38
      %p45 = scmp.eq.s32.totalorder %s17, 15
      %p46 = por %p44, %p45
      %p47 = scmp.ne.s32.totalorder %s39, %s42
      %p48 = scmp.eq.s32.totalorder %s17, 0
      %p49 = por %p47, %p48
      %p50 = scmp.ne.s32.totalorder %s39, %s42
      %p51 = scmp.eq.s32.totalorder %s22, 15
      %p52 = por %p50, %p51
      %p53 = scmp.ne.s32.totalorder %s42, %s43
      %p54 = scmp.eq.s32.totalorder %s22, 0
      %p55 = por %p53, %p54
      %p56 = scmp.ne.s32.totalorder %s42, %s43
      %p57 = scmp.eq.s32.totalorder %s23, 15
      %p58 = por %p56, %p57
      %p60 = scmp.ne.s32.totalorder %s43, %s59
      %p61 = scmp.eq.s32.totalorder %s23, 0
      %p62 = por %p60, %p61
      %s64 = sadd.s32 %s63, 1
      %p67 = scmp.eq.s32.totalorder %s17, 15
      %p68 = scmp.ne.s32.totalorder %s63, %s65
      %p69 = scmp.eq.s32.totalorder %s17, 0
      %p70 = por %p68, %p69
      %p71 = scmp.ne.s32.totalorder %s63, %s65
      %p72 = scmp.eq.s32.totalorder %s22, 15
      %p73 = por %p71, %p72
      %p74 = scmp.ne.s32.totalorder %s65, %s66
      %p75 = scmp.eq.s32.totalorder %s22, 0
      %p76 = por %p74, %p75
      %p77 = scmp.ne.s32.totalorder %s65, %s66
      %p78 = scmp.eq.s32.totalorder %s23, 15
      %p79 = por %p77, %p78
      %p81 = scmp.ne.s32.totalorder %s66, %s80
      %p82 = scmp.eq.s32.totalorder %s23, 0
      %p83 = por %p81, %p82
      %s85 = sadd.s32 %s84, 1
      %p88 = scmp.eq.s32.totalorder %s17, 15
      %p89 = scmp.ne.s32.totalorder %s84, %s86
      %p90 = scmp.eq.s32.totalorder %s17, 0
      %p91 = por %p89, %p90
      %p92 = scmp.ne.s32.totalorder %s84, %s86
      %p93 = scmp.eq.s32.totalorder %s22, 15
      %p94 = por %p92, %p93
      %p95 = scmp.ne.s32.totalorder %s86, %s87
      %p96 = scmp.eq.s32.totalorder %s22, 0
      %p97 = por %p95, %p96
      %p98 = scmp.ne.s32.totalorder %s86, %s87
      %p99 = scmp.eq.s32.totalorder %s23, 15
      %p100 = por %p98, %p99
      %p102 = scmp.ne.s32.totalorder %s87, %s101
      %p103 = scmp.eq.s32.totalorder %s23, 0
      %p104 = por %p102, %p103
      %s106 = sadd.s32 %s105, 1
      %p109 = scmp.eq.s32.totalorder %s17, 15
      %p110 = scmp.ne.s32.totalorder %s105, %s107
      %p111 = scmp.eq.s32.totalorder %s17, 0
      %p112 = por %p110, %p111
      %p113 = scmp.ne.s32.totalorder %s105, %s107
      %p114 = scmp.eq.s32.totalorder %s22, 15
      %p115 = por %p113, %p114
      %p116 = scmp.ne.s32.totalorder %s107, %s108
      %p117 = scmp.eq.s32.totalorder %s22, 0
      %p118 = por %p116, %p117
      %p119 = scmp.ne.s32.totalorder %s107, %s108
      %p120 = scmp.eq.s32.totalorder %s23, 15
      %p121 = por %p119, %p120
      %p123 = scmp.ne.s32.totalorder %s108, %s122
      %p124 = scmp.eq.s32.totalorder %s23, 0
      %p125 = por %p123, %p124
      %s127 = sadd.s32 %s126, 1
      %p130 = scmp.eq.s32.totalorder %s17, 15
      %p131 = scmp.ne.s32.totalorder %s126, %s128
      %p132 = scmp.eq.s32.totalorder %s17, 0
      %p133 = por %p131, %p132
      %p134 = scmp.ne.s32.totalorder %s126, %s128
      %p135 = scmp.eq.s32.totalorder %s22, 15
      %p136 = por %p134, %p135
      %p137 = scmp.ne.s32.totalorder %s128, %s129
      %p138 = scmp.eq.s32.totalorder %s22, 0
      %p139 = por %p137, %p138
      %p140 = scmp.ne.s32.totalorder %s128, %s129
      %p141 = scmp.eq.s32.totalorder %s23, 15
      %p142 = por %p140, %p141
      %p144 = scmp.ne.s32.totalorder %s129, %s143
      %p145 = scmp.eq.s32.totalorder %s23, 0
      %p146 = por %p144, %p145
      %s148 = sadd.s32 %s147, 1
      %p151 = scmp.eq.s32.totalorder %s17, 15
      %p152 = scmp.ne.s32.totalorder %s147, %s149
      %p153 = scmp.eq.s32.totalorder %s17, 0
      %p154 = por %p152, %p153
      %p155 = scmp.ne.s32.totalorder %s147, %s149
      %p156 = scmp.eq.s32.totalorder %s22, 15
      %p157 = por %p155, %p156
      %p158 = scmp.ne.s32.totalorder %s149, %s150
      %p159 = scmp.eq.s32.totalorder %s22, 0
      %p160 = por %p158, %p159
      %p161 = scmp.ne.s32.totalorder %s149, %s150
      %p162 = scmp.eq.s32.totalorder %s23, 15
      %p163 = por %p161, %p162
      %p165 = scmp.ne.s32.totalorder %s150, %s164
      %p166 = scmp.eq.s32.totalorder %s23, 0
      %p167 = por %p165, %p166
      %s169 = sadd.s32 %s168, 1
      %p172 = scmp.eq.s32.totalorder %s17, 15
      %p173 = scmp.ne.s32.totalorder %s168, %s170
      %p174 = scmp.eq.s32.totalorder %s17, 0
      %p175 = por %p173, %p174
      %p176 = scmp.ne.s32.totalorder %s168, %s170
      %p177 = scmp.eq.s32.totalorder %s22, 15
      %p178 = por %p176, %p177
      %p179 = scmp.ne.s32.totalorder %s170, %s171
      %p180 = scmp.eq.s32.totalorder %s22, 0
      %p181 = por %p179, %p180
      %p182 = scmp.ne.s32.totalorder %s170, %s171
      %p183 = scmp.eq.s32.totalorder %s23, 15
      %p184 = por %p182, %p183
      %p186 = scmp.ne.s32.totalorder %s171, %s185
      %p187 = scmp.eq.s32.totalorder %s23, 0
      %p188 = por %p186, %p187
      %p189 = scmp.le.s32.totalorder 1, %s17
      %p190 = scmp.lt.s32.totalorder %s17, 17
      %p191 = pnand %p189, %p190
      %p192 = pneg %p191
      // Predicated region
      $region9: #{_kipfnet_pallas.1} parent=5 // pred_check
        _
      $region10: #{_kipfnet_pallas.1} parent=5 // pred_check_branch
        %194 = sbr.rel (%p191) target = $region12
      $region11: #{_kipfnet_pallas.1} parent=5 // pred_region
        %s195 = ssub.s32 %s17, 1
        // Predicated region
        $region13: #{_kipfnet_pallas.1} parent=11 // pred_check
          %p196 = pneg %p76
        $region14: #{_kipfnet_pallas.1} parent=11 // pred_check_branch
          %198 = sbr.rel (%p196) target = $region16
        $region15: #{_kipfnet_pallas.1} parent=11 // pred_region
          _
        $region16: #{_kipfnet_pallas.1} parent=11 // pred_fallthru
          _
        // Predicated region
        $region17: #{_kipfnet_pallas.1} parent=11 // pred_check
          %p199 = pneg %p97
        $region18: #{_kipfnet_pallas.1} parent=11 // pred_check_branch
          %201 = sbr.rel (%p199) target = $region20
        $region19: #{_kipfnet_pallas.1} parent=11 // pred_region
          %s203 = ssub.s32 1024, 1024
          %204 = vsyncadd [#allocation9], %s203
          %s205 = sshll.u32 [#allocation8], 4
          %s206 = int_to_ptr.vmem [resolvable:$true] %s205
          %211 = dma.hbm_to_vmem [thread:$0]  %s2, 1024, %s206, [#allocation9], 64, 64, 4
        $region20: #{_kipfnet_pallas.1} parent=11 // pred_fallthru
          _
        // Predicated region
        $region21: #{_kipfnet_pallas.1} parent=11 // pred_check
          %p212 = pneg %p118
        $region22: #{_kipfnet_pallas.1} parent=11 // pred_check_branch
          %214 = sbr.rel (%p212) target = $region24
        $region23: #{_kipfnet_pallas.1} parent=11 // pred_region
          _
        $region24: #{_kipfnet_pallas.1} parent=11 // pred_fallthru
          _
        // Predicated region
        $region25: #{_kipfnet_pallas.1} parent=11 // pred_check
          %p215 = pneg %p139
        $region26: #{_kipfnet_pallas.1} parent=11 // pred_check_branch
          %217 = sbr.rel (%p215) target = $region28
        $region27: #{_kipfnet_pallas.1} parent=11 // pred_region
          _
        $region28: #{_kipfnet_pallas.1} parent=11 // pred_fallthru
          _
        // Predicated region
        $region29: #{_kipfnet_pallas.1} parent=11 // pred_check
          %p218 = pneg %p160
        $region30: #{_kipfnet_pallas.1} parent=11 // pred_check_branch
          %220 = sbr.rel (%p218) target = $region32
        $region31: #{_kipfnet_pallas.1} parent=11 // pred_region
          _
        $region32: #{_kipfnet_pallas.1} parent=11 // pred_fallthru
          _
      $region12: #{_kipfnet_pallas.1} parent=5 // pred_fallthru
        _
      %p221 = scmp.lt.s32.totalorder %s17, 16
      // Predicated region
      $region33: #{_kipfnet_pallas.1} parent=5 // pred_check
        %p222 = pneg %p221
      $region34: #{_kipfnet_pallas.1} parent=5 // pred_check_branch
        %224 = sbr.rel (%p222) target = $region36
      $region35: #{_kipfnet_pallas.1} parent=5 // pred_region
        // Predicated region
        $region37: #{_kipfnet_pallas.1} parent=35 // pred_check
          %p225 = pneg %p49
        $region38: #{_kipfnet_pallas.1} parent=35 // pred_check_branch
          %227 = sbr.rel (%p225) target = $region40
        $region39: #{_kipfnet_pallas.1} parent=35 // pred_region
          %s228 = sand.u32 %s39, 1
          %s229 = scalar_lea.sflag [#allocation6], %s228
          %s230 = sand.u32 %s39, 1
          %s231 = smul.addr %s230, 128
          %s232 = scalar_lea.vmem [#allocation5], %s231
          %s233 = smul.u32 16, %s25
          %s235 = ssub.s32 2048, 2048
          %236 = vsyncadd %s229, %s235
          %s237 = smul.addr %s233, 2
          %s238 = smul.addr %s237, 64
          %s239 = scalar_lea.hbm %s0, %s238
          %s240 = sshll.u32 %s232, 4
          %s241 = int_to_ptr.vmem [resolvable:$true] %s240
          %246 = dma.hbm_to_vmem [thread:$0]  %s239, 2048, %s241, %s229, 128, 128, 8
        $region40: #{_kipfnet_pallas.1} parent=35 // pred_fallthru
          _
      $region36: #{_kipfnet_pallas.1} parent=5 // pred_fallthru
        _
      %p247 = scmp.le.s32.totalorder 1, %s17
      %p248 = scmp.lt.s32.totalorder %s17, 17
      %p249 = pnand %p247, %p248
      %p250 = pneg %p249
      // Predicated region
      $region41: #{_kipfnet_pallas.1} parent=5 // pred_check
        _
      $region42: #{_kipfnet_pallas.1} parent=5 // pred_check_branch
        %252 = sbr.rel (%p249) target = $region44
      $region43: #{_kipfnet_pallas.1} parent=5 // pred_region
        %s253 = ssub.s32 %s17, 1
        %s254 = sand.u32 %s42, 1
        %s255 = scalar_lea.sflag [#allocation6], %s254
        %s256 = sand.u32 %s42, 1
        %s257 = smul.addr %s256, 128
        %s258 = scalar_lea.vmem [#allocation5], %s257
        // Predicated region
        $region45: #{_kipfnet_pallas.1} parent=43 // pred_check
          %p259 = pneg %p55
        $region46: #{_kipfnet_pallas.1} parent=43 // pred_check_branch
          %261 = sbr.rel (%p259) target = $region48
        $region47: #{_kipfnet_pallas.1} parent=43 // pred_region
          %262 = dma.done %s255, 2048
        $region48: #{_kipfnet_pallas.1} parent=43 // pred_fallthru
          _
        // Predicated region
        $region49: #{_kipfnet_pallas.1} parent=43 // pred_check
          %p263 = pneg %p97
        $region50: #{_kipfnet_pallas.1} parent=43 // pred_check_branch
          %265 = sbr.rel (%p263) target = $region52
        $region51: #{_kipfnet_pallas.1} parent=43 // pred_region
          %266 = dma.done [#allocation9], 1024
        $region52: #{_kipfnet_pallas.1} parent=43 // pred_fallthru
          _
        %s267 = sand.u32 %s42, 1
        %s268 = scalar_lea.sflag [#allocation6], %s267
        %s269 = sand.u32 %s42, 1
        %s270 = smul.addr %s269, 128
        %s271 = scalar_lea.vmem [#allocation5], %s270
        %p272 = pneg %p55
        %p273 = pneg %p52
        %p274 = pneg %p76
        %p275 = pneg %p73
        %p276 = pneg %p97
        %p277 = pneg %p94
        %p278 = pneg %p118
        %p279 = pneg %p115
        %p280 = pneg %p139
        %p281 = pneg %p136
        %p282 = pneg %p160
        %p283 = pneg %p157
        %p284 = pneg %p181
        %p285 = pneg %p178
        %s286 = smul.u32 16, %s27
        %s288 = smul.u32 %s27, 128
        %v289 = vld [vmem:[%s258] sm:$0xff]
        %v290 = vld [vmem:[%s258 + $0x8] sm:$0xff]
        %v291 = vld [vmem:[%s258 + $0x10] sm:$0xff]
        %v292 = vld [vmem:[%s258 + $0x18] sm:$0xff]
        %v293 = vld [vmem:[%s258 + $0x20] sm:$0xff]
        %v294 = vld [vmem:[%s258 + $0x28] sm:$0xff]
        %v295 = vld [vmem:[%s258 + $0x30] sm:$0xff]
        %v296 = vld [vmem:[%s258 + $0x38] sm:$0xff]
        %v297 = vld [vmem:[%s258 + $0x40] sm:$0xff]
        %v298 = vld [vmem:[%s258 + $0x48] sm:$0xff]
        %v299 = vld [vmem:[%s258 + $0x50] sm:$0xff]
        %v300 = vld [vmem:[%s258 + $0x58] sm:$0xff]
        %v301 = vld [vmem:[%s258 + $0x60] sm:$0xff]
        %v302 = vld [vmem:[%s258 + $0x68] sm:$0xff]
        %v303 = vld [vmem:[%s258 + $0x70] sm:$0xff]
        %v304 = vld [vmem:[%s258 + $0x78] sm:$0xff]
        %p305 = scmp.eq.s32.totalorder %s26, 0
        // Predicated region
        $region53: #{_kipfnet_pallas.1} parent=43 // pred_check
          %p306 = pneg %p305
        $region54: #{_kipfnet_pallas.1} parent=43 // pred_check_branch
          %308 = sbr.rel (%p306) target = $region56
        $region55: #{_kipfnet_pallas.1} parent=43 // pred_region
          %s309 = sshra.s32 %s288, 3
          %s310 = sand.u32 %s288, 7
          %s311 = smul.addr %s309, 4
          %s312 = scalar_lea.vmem %s1, %s311
          %v313 = vld [vmem:[%s312] sm:$0xf]
          %v314 = vld [vmem:[%s312 + $0x4] sm:$0xf]
          %v315 = vld [vmem:[%s312 + $0x8] sm:$0xf]
          %v316 = vld [vmem:[%s312 + $0xc] sm:$0xf]
          %v317 = vld [vmem:[%s312 + $0x10] sm:$0xf]
          %v318 = vld [vmem:[%s312 + $0x14] sm:$0xf]
          %v319 = vld [vmem:[%s312 + $0x18] sm:$0xf]
          %v320 = vld [vmem:[%s312 + $0x1c] sm:$0xf]
          %v321 = vld [vmem:[%s312 + $0x20] sm:$0xf]
          %v322 = vld [vmem:[%s312 + $0x24] sm:$0xf]
          %v323 = vld [vmem:[%s312 + $0x28] sm:$0xf]
          %v324 = vld [vmem:[%s312 + $0x2c] sm:$0xf]
          %v325 = vld [vmem:[%s312 + $0x30] sm:$0xf]
          %v326 = vld [vmem:[%s312 + $0x34] sm:$0xf]
          %v327 = vld [vmem:[%s312 + $0x38] sm:$0xf]
          %v328 = vld [vmem:[%s312 + $0x3c] sm:$0xf]
          %v329 = vld [vmem:[%s1] sm:$0xf]
          %v330 = vld [vmem:[%s1 + $0x4] sm:$0xf]
          %v331 = vld [vmem:[%s1 + $0x8] sm:$0xf]
          %v332 = vld [vmem:[%s1 + $0xc] sm:$0xf]
          %v333 = vld [vmem:[%s1 + $0x10] sm:$0xf]
          %v334 = vld [vmem:[%s1 + $0x14] sm:$0xf]
          %v335 = vld [vmem:[%s1 + $0x18] sm:$0xf]
          %v336 = vld [vmem:[%s1 + $0x1c] sm:$0xf]
          %v337 = vld [vmem:[%s1 + $0x20] sm:$0xf]
          %v338 = vld [vmem:[%s1 + $0x24] sm:$0xf]
          %v339 = vld [vmem:[%s1 + $0x28] sm:$0xf]
          %v340 = vld [vmem:[%s1 + $0x2c] sm:$0xf]
          %v341 = vld [vmem:[%s1 + $0x30] sm:$0xf]
          %v342 = vld [vmem:[%s1 + $0x34] sm:$0xf]
          %v343 = vld [vmem:[%s1 + $0x38] sm:$0xf]
          %v344 = vld [vmem:[%s1 + $0x3c] sm:$0xf]
          %v345 = vld [vmem:[%s1 + $0x40] sm:$0xf]
          %v346 = vld [vmem:[%s1 + $0x44] sm:$0xf]
          %v347 = vld [vmem:[%s1 + $0x48] sm:$0xf]
          %v348 = vld [vmem:[%s1 + $0x4c] sm:$0xf]
          %v349 = vld [vmem:[%s1 + $0x50] sm:$0xf]
          %v350 = vld [vmem:[%s1 + $0x54] sm:$0xf]
          %v351 = vld [vmem:[%s1 + $0x58] sm:$0xf]
          %v352 = vld [vmem:[%s1 + $0x5c] sm:$0xf]
          %v353 = vld [vmem:[%s1 + $0x60] sm:$0xf]
          %v354 = vld [vmem:[%s1 + $0x64] sm:$0xf]
          %v355 = vld [vmem:[%s1 + $0x68] sm:$0xf]
          %v356 = vld [vmem:[%s1 + $0x6c] sm:$0xf]
          %v357 = vld [vmem:[%s1 + $0x70] sm:$0xf]
          %v358 = vld [vmem:[%s1 + $0x74] sm:$0xf]
          %v359 = vld [vmem:[%s1 + $0x78] sm:$0xf]
          %v360 = vld [vmem:[%s1 + $0x7c] sm:$0xf]
          %v377 = vunpack.c.l.b16 %v289
          %v378 = vunpack.c.h.b16 %v289
          %v379 = vunpack.c.l.b16 %v290
          %v380 = vunpack.c.h.b16 %v290
          %v381 = vunpack.c.l.b16 %v291
          %v382 = vunpack.c.h.b16 %v291
          %v383 = vunpack.c.l.b16 %v292
          %v384 = vunpack.c.h.b16 %v292
          %v385 = vunpack.c.l.b16 %v293
          %v386 = vunpack.c.h.b16 %v293
          %v387 = vunpack.c.l.b16 %v294
          %v388 = vunpack.c.h.b16 %v294
          %v389 = vunpack.c.l.b16 %v295
          %v390 = vunpack.c.h.b16 %v295
          %v391 = vunpack.c.l.b16 %v296
          %v392 = vunpack.c.h.b16 %v296
          %v393 = vunpack.c.l.b16 %v297
          %v394 = vunpack.c.h.b16 %v297
          %v395 = vunpack.c.l.b16 %v298
          %v396 = vunpack.c.h.b16 %v298
          %v397 = vunpack.c.l.b16 %v299
          %v398 = vunpack.c.h.b16 %v299
          %v399 = vunpack.c.l.b16 %v300
          %v400 = vunpack.c.h.b16 %v300
          %v401 = vunpack.c.l.b16 %v301
          %v402 = vunpack.c.h.b16 %v301
          %v403 = vunpack.c.l.b16 %v302
          %v404 = vunpack.c.h.b16 %v302
          %v405 = vunpack.c.l.b16 %v303
          %v406 = vunpack.c.h.b16 %v303
          %v407 = vunpack.c.l.b16 %v304
          %v408 = vunpack.c.h.b16 %v304
          %v409 = vpack.c.b16 %v379, %v377
          %v410 = vpack.c.b16 %v380, %v378
          %v411 = vpack.c.b16 %v383, %v381
          %v412 = vpack.c.b16 %v384, %v382
          %v413 = vpack.c.b16 %v387, %v385
          %v414 = vpack.c.b16 %v388, %v386
          %v415 = vpack.c.b16 %v391, %v389
          %v416 = vpack.c.b16 %v392, %v390
          %v417 = vpack.c.b16 %v395, %v393
          %v418 = vpack.c.b16 %v396, %v394
          %v419 = vpack.c.b16 %v399, %v397
          %v420 = vpack.c.b16 %v400, %v398
          %v421 = vpack.c.b16 %v403, %v401
          %v422 = vpack.c.b16 %v404, %v402
          %v423 = vpack.c.b16 %v407, %v405
          %v424 = vpack.c.b16 %v408, %v406
          %v473 = vunpack.c.l.b16 %v329
          %v474 = vunpack.c.l.b16 %v330
          %v475 = vunpack.c.l.b16 %v331
          %v476 = vunpack.c.l.b16 %v332
          %v477 = vunpack.c.l.b16 %v333
          %v478 = vunpack.c.l.b16 %v334
          %v479 = vunpack.c.l.b16 %v335
          %v480 = vunpack.c.l.b16 %v336
          %v481 = vunpack.c.l.b16 %v337
          %v482 = vunpack.c.l.b16 %v338
          %v483 = vunpack.c.l.b16 %v339
          %v484 = vunpack.c.l.b16 %v340
          %v485 = vunpack.c.l.b16 %v341
          %v486 = vunpack.c.l.b16 %v342
          %v487 = vunpack.c.l.b16 %v343
          %v488 = vunpack.c.l.b16 %v344
          %v489 = vunpack.c.l.b16 %v345
          %v490 = vunpack.c.l.b16 %v346
          %v491 = vunpack.c.l.b16 %v347
          %v492 = vunpack.c.l.b16 %v348
          %v493 = vunpack.c.l.b16 %v349
          %v494 = vunpack.c.l.b16 %v350
          %v495 = vunpack.c.l.b16 %v351
          %v496 = vunpack.c.l.b16 %v352
          %v497 = vunpack.c.l.b16 %v353
          %v498 = vunpack.c.l.b16 %v354
          %v499 = vunpack.c.l.b16 %v355
          %v500 = vunpack.c.l.b16 %v356
          %v501 = vunpack.c.l.b16 %v357
          %v502 = vunpack.c.l.b16 %v358
          %v503 = vunpack.c.l.b16 %v359
          %v504 = vunpack.c.l.b16 %v360
          %v505 = vpack.c.b16 %v474, %v473
          %v506 = vpack.c.b16 %v476, %v475
          %v507 = vpack.c.b16 %v478, %v477
          %v508 = vpack.c.b16 %v480, %v479
          %v509 = vpack.c.b16 %v482, %v481
          %v510 = vpack.c.b16 %v484, %v483
          %v511 = vpack.c.b16 %v486, %v485
          %v512 = vpack.c.b16 %v488, %v487
          %v513 = vpack.c.b16 %v490, %v489
          %v514 = vpack.c.b16 %v492, %v491
          %v515 = vpack.c.b16 %v494, %v493
          %v516 = vpack.c.b16 %v496, %v495
          %v517 = vpack.c.b16 %v498, %v497
          %v518 = vpack.c.b16 %v500, %v499
          %v519 = vpack.c.b16 %v502, %v501
          %v520 = vpack.c.b16 %v504, %v503
          %537 = vmatprep.subr.bf16.mxu0 0
          %538 = vmatpush1.bf16.msra.mxu0 %v512
          %539 = vmatprep.subr.bf16.mxu0 0
          %540 = vmatpush1.bf16.msra.mxu0 %v511
          %541 = vmatprep.subr.bf16.mxu0 0
          %542 = vmatpush1.bf16.msra.mxu0 %v510
          %543 = vmatprep.subr.bf16.mxu0 0
          %544 = vmatpush1.bf16.msra.mxu0 %v509
          %545 = vmatprep.subr.bf16.mxu0 0
          %546 = vmatpush1.bf16.msra.mxu0 %v508
          %547 = vmatprep.subr.bf16.mxu0 0
          %548 = vmatpush1.bf16.msra.mxu0 %v507
          %549 = vmatprep.subr.bf16.mxu0 0
          %550 = vmatpush1.bf16.msra.mxu0 %v506
          %551 = vmatprep.subr.bf16.mxu0 0
          %552 = vmatpush1.bf16.msra.mxu0 %v505
          %553 = vmatprep.subr.bf16.mxu0 0
          %554 = vmatpush2.bf16.msra.mxu0 %v520
          %555 = vmatprep.subr.bf16.mxu0 0
          %556 = vmatpush2.bf16.msra.mxu0 %v519
          %557 = vmatprep.subr.bf16.mxu0 0
          %558 = vmatpush2.bf16.msra.mxu0 %v518
          %559 = vmatprep.subr.bf16.mxu0 0
          %560 = vmatpush2.bf16.msra.mxu0 %v517
          %561 = vmatprep.subr.bf16.mxu0 0
          %562 = vmatpush2.bf16.msra.mxu0 %v516
          %563 = vmatprep.subr.bf16.mxu0 0
          %564 = vmatpush2.bf16.msra.mxu0 %v515
          %565 = vmatprep.subr.bf16.mxu0 0
          %566 = vmatpush2.bf16.msra.mxu0 %v514
          %567 = vmatprep.subr.bf16.mxu0 0
          %568 = vmatpush2.bf16.msra.mxu0 %v513
          %569 = vmatprep.mubr.bf16.mxu0 %v410
          %570 = vmatmul.mubr.bf16.gmra.mxu0 %v409
          %v571 = vpop.f32.mrf.mxu0
          %v572 = vadd.f32 0.0, %v571
          %v573 = vpop.f32.mrf.mxu0
          %v574 = vpop.f32.mrf.mxu0
          %v575 = vadd.f32 0.0, %v574
          %v576 = vpop.f32.mrf.mxu0
          %577 = vmatprep.mubr.bf16.mxu0 %v412
          %578 = vmatmul.mubr.bf16.gmra.mxu0 %v411
          %v579 = vpop.f32.mrf.mxu0
          %v580 = vadd.f32 0.0, %v579
          %v581 = vpop.f32.mrf.mxu0
          %v582 = vpop.f32.mrf.mxu0
          %v583 = vadd.f32 0.0, %v582
          %v584 = vpop.f32.mrf.mxu0
          %585 = vmatprep.mubr.bf16.mxu0 %v414
          %586 = vmatmul.mubr.bf16.gmra.mxu0 %v413
          %v587 = vpop.f32.mrf.mxu0
          %v588 = vadd.f32 0.0, %v587
          %v589 = vpop.f32.mrf.mxu0
          %v590 = vpop.f32.mrf.mxu0
          %v591 = vadd.f32 0.0, %v590
          %v592 = vpop.f32.mrf.mxu0
          %593 = vmatprep.mubr.bf16.mxu0 %v416
          %594 = vmatmul.mubr.bf16.gmra.mxu0 %v415
          %v595 = vpop.f32.mrf.mxu0
          %v596 = vadd.f32 0.0, %v595
          %v597 = vpop.f32.mrf.mxu0
          %v598 = vpop.f32.mrf.mxu0
          %v599 = vadd.f32 0.0, %v598
          %v600 = vpop.f32.mrf.mxu0
          %601 = vmatprep.mubr.bf16.mxu0 %v418
          %602 = vmatmul.mubr.bf16.gmra.mxu0 %v417
          %v603 = vpop.f32.mrf.mxu0
          %v604 = vadd.f32 0.0, %v603
          %v605 = vpop.f32.mrf.mxu0
          %v606 = vpop.f32.mrf.mxu0
          %v607 = vadd.f32 0.0, %v606
          %v608 = vpop.f32.mrf.mxu0
          %609 = vmatprep.mubr.bf16.mxu0 %v420
          %610 = vmatmul.mubr.bf16.gmra.mxu0 %v419
          %v611 = vpop.f32.mrf.mxu0
          %v612 = vadd.f32 0.0, %v611
          %v613 = vpop.f32.mrf.mxu0
          %v614 = vpop.f32.mrf.mxu0
          %v615 = vadd.f32 0.0, %v614
          %v616 = vpop.f32.mrf.mxu0
          %617 = vmatprep.mubr.bf16.mxu0 %v422
          %618 = vmatmul.mubr.bf16.gmra.mxu0 %v421
          %v619 = vpop.f32.mrf.mxu0
          %v620 = vadd.f32 0.0, %v619
          %v621 = vpop.f32.mrf.mxu0
          %v622 = vpop.f32.mrf.mxu0
          %v623 = vadd.f32 0.0, %v622
          %v624 = vpop.f32.mrf.mxu0
          %625 = vmatprep.mubr.bf16.mxu0 %v424
          %626 = vmatmul.mubr.bf16.gmra.mxu0 %v423
          %v627 = vpop.f32.mrf.mxu0
          %v628 = vadd.f32 0.0, %v627
          %v629 = vpop.f32.mrf.mxu0
          %v630 = vpop.f32.mrf.mxu0
          %v631 = vadd.f32 0.0, %v630
          %v632 = vpop.f32.mrf.mxu0
          %633 = vdwg.mxu0
          %v634 = vpack.c.bf16 %v575, %v572
          %v635 = vpack.c.bf16 %v583, %v580
          %v636 = vpack.c.bf16 %v591, %v588
          %v637 = vpack.c.bf16 %v599, %v596
          %v638 = vpack.c.bf16 %v607, %v604
          %v639 = vpack.c.bf16 %v615, %v612
          %v640 = vpack.c.bf16 %v623, %v620
          %v641 = vpack.c.bf16 %v631, %v628
          %v642 = vld [vmem:[#allocation8] sm:$0xf]
          %v643 = vld [vmem:[#allocation8 + $0x4] sm:$0xf]
          %v644 = vld [vmem:[#allocation8 + $0x8] sm:$0xf]
          %v645 = vld [vmem:[#allocation8 + $0xc] sm:$0xf]
          %v648 = vunpack.c.l.b16 %v644
          %v649 = vunpack.c.l.b16 %v645
          %v650 = vpack.c.b16 %v649, %v648
          %vm652 = vcmask 130048
          %v654 = vsel %vm652, %v634, 0
          %v657 = vsel %vm652, %v635, 0
          %v660 = vsel %vm652, %v636, 0
          %v663 = vsel %vm652, %v637, 0
          %v666 = vsel %vm652, %v638, 0
          %v669 = vsel %vm652, %v639, 0
          %v672 = vsel %vm652, %v640, 0
          %v675 = vsel %vm652, %v641, 0
          %677 = vmatprep.subr.bf16.mxu0 0
          %678 = vmatpush1.bf16.msra.mxu0 0
          %679 = vmatprep.subr.bf16.mxu0 0
          %680 = vmatpush1.bf16.msra.mxu0 0
          %681 = vmatprep.subr.bf16.mxu0 0
          %682 = vmatpush1.bf16.msra.mxu0 0
          %683 = vmatprep.subr.bf16.mxu0 0
          %684 = vmatpush1.bf16.msra.mxu0 0
          %685 = vmatprep.subr.bf16.mxu0 0
          %686 = vmatpush1.bf16.msra.mxu0 0
          %687 = vmatprep.subr.bf16.mxu0 0
          %688 = vmatpush1.bf16.msra.mxu0 0
          %689 = vmatprep.subr.bf16.mxu0 0
          %690 = vmatpush1.bf16.msra.mxu0 0
          %691 = vmatprep.subr.bf16.mxu0 0
          %692 = vmatpush1.bf16.msra.mxu0 %v650
          %693 = vmatprep.subr.bf16.mxu0 0
          %694 = vmatpush2.bf16.msra.mxu0 0
          %695 = vmatprep.subr.bf16.mxu0 0
          %696 = vmatpush2.bf16.msra.mxu0 0
          %697 = vmatprep.subr.bf16.mxu0 0
          %698 = vmatpush2.bf16.msra.mxu0 0
          %699 = vmatprep.subr.bf16.mxu0 0
          %700 = vmatpush2.bf16.msra.mxu0 0
          %701 = vmatprep.subr.bf16.mxu0 0
          %702 = vmatpush2.bf16.msra.mxu0 0
          %703 = vmatprep.subr.bf16.mxu0 0
          %704 = vmatpush2.bf16.msra.mxu0 0
          %705 = vmatprep.subr.bf16.mxu0 0
          %706 = vmatpush2.bf16.msra.mxu0 0
          %707 = vmatprep.subr.bf16.mxu0 0
          %708 = vmatpush2.bf16.msra.mxu0 0
          %709 = vmatprep.mubr.bf16.mxu0 0
          %710 = vmatmul.mubr.bf16.gmra.mxu0 %v654
          %v711 = vpop.f32.mrf.mxu0
          %v712 = vadd.f32 0.0, %v711
          %v713 = vpop.f32.mrf.mxu0
          %v714 = vpop.f32.mrf.mxu0
          %v715 = vadd.f32 0.0, %v714
          %v716 = vpop.f32.mrf.mxu0
          %717 = vmatprep.mubr.bf16.mxu0 0
          %718 = vmatmul.mubr.bf16.gmra.mxu0 %v657
          %v719 = vpop.f32.mrf.mxu0
          %v720 = vadd.f32 0.0, %v719
          %v721 = vpop.f32.mrf.mxu0
          %v722 = vpop.f32.mrf.mxu0
          %v723 = vadd.f32 0.0, %v722
          %v724 = vpop.f32.mrf.mxu0
          %725 = vmatprep.mubr.bf16.mxu0 0
          %726 = vmatmul.mubr.bf16.gmra.mxu0 %v660
          %v727 = vpop.f32.mrf.mxu0
          %v728 = vadd.f32 0.0, %v727
          %v729 = vpop.f32.mrf.mxu0
          %v730 = vpop.f32.mrf.mxu0
          %v731 = vadd.f32 0.0, %v730
          %v732 = vpop.f32.mrf.mxu0
          %733 = vmatprep.mubr.bf16.mxu0 0
          %734 = vmatmul.mubr.bf16.gmra.mxu0 %v663
          %v735 = vpop.f32.mrf.mxu0
          %v736 = vadd.f32 0.0, %v735
          %v737 = vpop.f32.mrf.mxu0
          %v738 = vpop.f32.mrf.mxu0
          %v739 = vadd.f32 0.0, %v738
          %v740 = vpop.f32.mrf.mxu0
          %741 = vmatprep.mubr.bf16.mxu0 0
          %742 = vmatmul.mubr.bf16.gmra.mxu0 %v666
          %v743 = vpop.f32.mrf.mxu0
          %v744 = vadd.f32 0.0, %v743
          %v745 = vpop.f32.mrf.mxu0
          %v746 = vpop.f32.mrf.mxu0
          %v747 = vadd.f32 0.0, %v746
          %v748 = vpop.f32.mrf.mxu0
          %749 = vmatprep.mubr.bf16.mxu0 0
          %750 = vmatmul.mubr.bf16.gmra.mxu0 %v669
          %v751 = vpop.f32.mrf.mxu0
          %v752 = vadd.f32 0.0, %v751
          %v753 = vpop.f32.mrf.mxu0
          %v754 = vpop.f32.mrf.mxu0
          %v755 = vadd.f32 0.0, %v754
          %v756 = vpop.f32.mrf.mxu0
          %757 = vmatprep.mubr.bf16.mxu0 0
          %758 = vmatmul.mubr.bf16.gmra.mxu0 %v672
          %v759 = vpop.f32.mrf.mxu0
          %v760 = vadd.f32 0.0, %v759
          %v761 = vpop.f32.mrf.mxu0
          %v762 = vpop.f32.mrf.mxu0
          %v763 = vadd.f32 0.0, %v762
          %v764 = vpop.f32.mrf.mxu0
          %765 = vmatprep.mubr.bf16.mxu0 0
          %766 = vmatmul.mubr.bf16.gmra.mxu0 %v675
          %v767 = vpop.f32.mrf.mxu0
          %v768 = vadd.f32 0.0, %v767
          %v769 = vpop.f32.mrf.mxu0
          %v770 = vpop.f32.mrf.mxu0
          %v771 = vadd.f32 0.0, %v770
          %v772 = vpop.f32.mrf.mxu0
          %773 = vdwg.mxu0
          %v790 = vunpack.c.l.b16 %v313
          %v791 = vunpack.c.l.b16 %v314
          %v792 = vunpack.c.l.b16 %v315
          %v793 = vunpack.c.l.b16 %v316
          %v794 = vunpack.c.l.b16 %v317
          %v795 = vunpack.c.l.b16 %v318
          %v796 = vunpack.c.l.b16 %v319
          %v797 = vunpack.c.l.b16 %v320
          %v798 = vunpack.c.l.b16 %v321
          %v799 = vunpack.c.l.b16 %v322
          %v800 = vunpack.c.l.b16 %v323
          %v801 = vunpack.c.l.b16 %v324
          %v802 = vunpack.c.l.b16 %v325
          %v803 = vunpack.c.l.b16 %v326
          %v804 = vunpack.c.l.b16 %v327
          %v805 = vunpack.c.l.b16 %v328
          %v806 = vpack.c.b16 %v791, %v790
          %v807 = vpack.c.b16 %v793, %v792
          %v808 = vpack.c.b16 %v795, %v794
          %v809 = vpack.c.b16 %v797, %v796
          %v810 = vpack.c.b16 %v799, %v798
          %v811 = vpack.c.b16 %v801, %v800
          %v812 = vpack.c.b16 %v803, %v802
          %v813 = vpack.c.b16 %v805, %v804
          %v816 = vunpack.c.l.b16 %v642
          %v817 = vunpack.c.l.b16 %v643
          %v818 = vpack.c.b16 %v817, %v816
          %v821 = vsel %vm652, %v806, 0
          %v824 = vsel %vm652, %v807, 0
          %v827 = vsel %vm652, %v808, 0
          %v830 = vsel %vm652, %v809, 0
          %v833 = vsel %vm652, %v810, 0
          %v836 = vsel %vm652, %v811, 0
          %v839 = vsel %vm652, %v812, 0
          %v842 = vsel %vm652, %v813, 0
          %844 = vmatprep.subr.bf16.mxu0 0
          %845 = vmatpush1.bf16.msra.mxu0 0
          %846 = vmatprep.subr.bf16.mxu0 0
          %847 = vmatpush1.bf16.msra.mxu0 0
          %848 = vmatprep.subr.bf16.mxu0 0
          %849 = vmatpush1.bf16.msra.mxu0 0
          %850 = vmatprep.subr.bf16.mxu0 0
          %851 = vmatpush1.bf16.msra.mxu0 0
          %852 = vmatprep.subr.bf16.mxu0 0
          %853 = vmatpush1.bf16.msra.mxu0 0
          %854 = vmatprep.subr.bf16.mxu0 0
          %855 = vmatpush1.bf16.msra.mxu0 0
          %856 = vmatprep.subr.bf16.mxu0 0
          %857 = vmatpush1.bf16.msra.mxu0 0
          %858 = vmatprep.subr.bf16.mxu0 0
          %859 = vmatpush1.bf16.msra.mxu0 %v818
          %860 = vmatprep.subr.bf16.mxu0 0
          %861 = vmatpush2.bf16.msra.mxu0 0
          %862 = vmatprep.subr.bf16.mxu0 0
          %863 = vmatpush2.bf16.msra.mxu0 0
          %864 = vmatprep.subr.bf16.mxu0 0
          %865 = vmatpush2.bf16.msra.mxu0 0
          %866 = vmatprep.subr.bf16.mxu0 0
          %867 = vmatpush2.bf16.msra.mxu0 0
          %868 = vmatprep.subr.bf16.mxu0 0
          %869 = vmatpush2.bf16.msra.mxu0 0
          %870 = vmatprep.subr.bf16.mxu0 0
          %871 = vmatpush2.bf16.msra.mxu0 0
          %872 = vmatprep.subr.bf16.mxu0 0
          %873 = vmatpush2.bf16.msra.mxu0 0
          %874 = vmatprep.subr.bf16.mxu0 0
          %875 = vmatpush2.bf16.msra.mxu0 0
          %876 = vmatprep.mubr.bf16.mxu0 0
          %877 = vmatmul.mubr.bf16.gmra.mxu0 %v821
          %v878 = vpop.f32.mrf.mxu0
          %v879 = vadd.f32 %v712, %v878
          %v880 = vpop.f32.mrf.mxu0
          %v881 = vpop.f32.mrf.mxu0
          %v882 = vadd.f32 %v715, %v881
          %v883 = vpop.f32.mrf.mxu0
          %884 = vmatprep.mubr.bf16.mxu0 0
          %885 = vmatmul.mubr.bf16.gmra.mxu0 %v824
          %v886 = vpop.f32.mrf.mxu0
          %v887 = vadd.f32 %v720, %v886
          %v888 = vpop.f32.mrf.mxu0
          %v889 = vpop.f32.mrf.mxu0
          %v890 = vadd.f32 %v723, %v889
          %v891 = vpop.f32.mrf.mxu0
          %892 = vmatprep.mubr.bf16.mxu0 0
          %893 = vmatmul.mubr.bf16.gmra.mxu0 %v827
          %v894 = vpop.f32.mrf.mxu0
          %v895 = vadd.f32 %v728, %v894
          %v896 = vpop.f32.mrf.mxu0
          %v897 = vpop.f32.mrf.mxu0
          %v898 = vadd.f32 %v731, %v897
          %v899 = vpop.f32.mrf.mxu0
          %900 = vmatprep.mubr.bf16.mxu0 0
          %901 = vmatmul.mubr.bf16.gmra.mxu0 %v830
          %v902 = vpop.f32.mrf.mxu0
          %v903 = vadd.f32 %v736, %v902
          %v904 = vpop.f32.mrf.mxu0
          %v905 = vpop.f32.mrf.mxu0
          %v906 = vadd.f32 %v739, %v905
          %v907 = vpop.f32.mrf.mxu0
          %908 = vmatprep.mubr.bf16.mxu0 0
          %909 = vmatmul.mubr.bf16.gmra.mxu0 %v833
          %v910 = vpop.f32.mrf.mxu0
          %v911 = vadd.f32 %v744, %v910
          %v912 = vpop.f32.mrf.mxu0
          %v913 = vpop.f32.mrf.mxu0
          %v914 = vadd.f32 %v747, %v913
          %v915 = vpop.f32.mrf.mxu0
          %916 = vmatprep.mubr.bf16.mxu0 0
          %917 = vmatmul.mubr.bf16.gmra.mxu0 %v836
          %v918 = vpop.f32.mrf.mxu0
          %v919 = vadd.f32 %v752, %v918
          %v920 = vpop.f32.mrf.mxu0
          %v921 = vpop.f32.mrf.mxu0
          %v922 = vadd.f32 %v755, %v921
          %v923 = vpop.f32.mrf.mxu0
          %924 = vmatprep.mubr.bf16.mxu0 0
          %925 = vmatmul.mubr.bf16.gmra.mxu0 %v839
          %v926 = vpop.f32.mrf.mxu0
          %v927 = vadd.f32 %v760, %v926
          %v928 = vpop.f32.mrf.mxu0
          %v929 = vpop.f32.mrf.mxu0
          %v930 = vadd.f32 %v763, %v929
          %v931 = vpop.f32.mrf.mxu0
          %932 = vmatprep.mubr.bf16.mxu0 0
          %933 = vmatmul.mubr.bf16.gmra.mxu0 %v842
          %v934 = vpop.f32.mrf.mxu0
          %v935 = vadd.f32 %v768, %v934
          %v936 = vpop.f32.mrf.mxu0
          %v937 = vpop.f32.mrf.mxu0
          %v938 = vadd.f32 %v771, %v937
          %v939 = vpop.f32.mrf.mxu0
          %940 = vdwg.mxu0
          %v941 = vld [vmem:[%s3] sm:$0x1]
          %v943 = vlaneseq
          %v944 = vshrl.u32 %v943, 7
          %v945 = vsub.s32 0, %v944
          %v946 = vrot.slane %v941, %v945
          %v948 = vadd.f32 %v879, %v946
          %v949 = vadd.f32 %v882, %v946
          %v950 = vadd.f32 %v887, %v946
          %v951 = vadd.f32 %v890, %v946
          %v952 = vadd.f32 %v895, %v946
          %v953 = vadd.f32 %v898, %v946
          %v954 = vadd.f32 %v903, %v946
          %v955 = vadd.f32 %v906, %v946
          %v956 = vadd.f32 %v911, %v946
          %v957 = vadd.f32 %v914, %v946
          %v958 = vadd.f32 %v919, %v946
          %v959 = vadd.f32 %v922, %v946
          %v960 = vadd.f32 %v927, %v946
          %v961 = vadd.f32 %v930, %v946
          %v962 = vadd.f32 %v935, %v946
          %v963 = vadd.f32 %v938, %v946
          %s964 = scalar_lea.vmem [#allocation3], %s288
          %965 = vst [vmem:[%s964] sm:$0xff] %v948
          %966 = vst [vmem:[%s964 + $0x8] sm:$0xff] %v949
          %967 = vst [vmem:[%s964 + $0x10] sm:$0xff] %v950
          %968 = vst [vmem:[%s964 + $0x18] sm:$0xff] %v951
          %969 = vst [vmem:[%s964 + $0x20] sm:$0xff] %v952
          %970 = vst [vmem:[%s964 + $0x28] sm:$0xff] %v953
          %971 = vst [vmem:[%s964 + $0x30] sm:$0xff] %v954
          %972 = vst [vmem:[%s964 + $0x38] sm:$0xff] %v955
          %973 = vst [vmem:[%s964 + $0x40] sm:$0xff] %v956
          %974 = vst [vmem:[%s964 + $0x48] sm:$0xff] %v957
          %975 = vst [vmem:[%s964 + $0x50] sm:$0xff] %v958
          %976 = vst [vmem:[%s964 + $0x58] sm:$0xff] %v959
          %977 = vst [vmem:[%s964 + $0x60] sm:$0xff] %v960
          %978 = vst [vmem:[%s964 + $0x68] sm:$0xff] %v961
          %979 = vst [vmem:[%s964 + $0x70] sm:$0xff] %v962
          %980 = vst [vmem:[%s964 + $0x78] sm:$0xff] %v963
          %s981 = smul.addr %s309, 4
          %s982 = scalar_lea.vmem [#allocation2], %s981
          %vm983 = vcmask 125952
          %984 = vst.msk [vmem:[%s982] sm:$0xf] %vm983, %v313
          %985 = vst.msk [vmem:[%s982 + $0x4] sm:$0xf] %vm983, %v314
          %986 = vst.msk [vmem:[%s982 + $0x8] sm:$0xf] %vm983, %v315
          %987 = vst.msk [vmem:[%s982 + $0xc] sm:$0xf] %vm983, %v316
          %988 = vst.msk [vmem:[%s982 + $0x10] sm:$0xf] %vm983, %v317
          %989 = vst.msk [vmem:[%s982 + $0x14] sm:$0xf] %vm983, %v318
          %990 = vst.msk [vmem:[%s982 + $0x18] sm:$0xf] %vm983, %v319
          %991 = vst.msk [vmem:[%s982 + $0x1c] sm:$0xf] %vm983, %v320
          %992 = vst.msk [vmem:[%s982 + $0x20] sm:$0xf] %vm983, %v321
          %993 = vst.msk [vmem:[%s982 + $0x24] sm:$0xf] %vm983, %v322
          %994 = vst.msk [vmem:[%s982 + $0x28] sm:$0xf] %vm983, %v323
          %995 = vst.msk [vmem:[%s982 + $0x2c] sm:$0xf] %vm983, %v324
          %996 = vst.msk [vmem:[%s982 + $0x30] sm:$0xf] %vm983, %v325
          %997 = vst.msk [vmem:[%s982 + $0x34] sm:$0xf] %vm983, %v326
          %998 = vst.msk [vmem:[%s982 + $0x38] sm:$0xf] %vm983, %v327
          %999 = vst.msk [vmem:[%s982 + $0x3c] sm:$0xf] %vm983, %v328
          %s1000 = sadd.s32 %s288, 256
          %v1009 = vunpack.c.l.b16 %v634
          %v1010 = vunpack.c.h.b16 %v634
          %v1011 = vunpack.c.l.b16 %v635
          %v1012 = vunpack.c.h.b16 %v635
          %v1013 = vunpack.c.l.b16 %v636
          %v1014 = vunpack.c.h.b16 %v636
          %v1015 = vunpack.c.l.b16 %v637
          %v1016 = vunpack.c.h.b16 %v637
          %v1017 = vunpack.c.l.b16 %v638
          %v1018 = vunpack.c.h.b16 %v638
          %v1019 = vunpack.c.l.b16 %v639
          %v1020 = vunpack.c.h.b16 %v639
          %v1021 = vunpack.c.l.b16 %v640
          %v1022 = vunpack.c.h.b16 %v640
          %v1023 = vunpack.c.l.b16 %v641
          %v1024 = vunpack.c.h.b16 %v641
          %v1025 = vpack.c.b16 %v1009, %v1009
          %v1026 = vpack.c.b16 %v1010, %v1010
          %v1027 = vpack.c.b16 %v1011, %v1011
          %v1028 = vpack.c.b16 %v1012, %v1012
          %v1029 = vpack.c.b16 %v1013, %v1013
          %v1030 = vpack.c.b16 %v1014, %v1014
          %v1031 = vpack.c.b16 %v1015, %v1015
          %v1032 = vpack.c.b16 %v1016, %v1016
          %v1033 = vpack.c.b16 %v1017, %v1017
          %v1034 = vpack.c.b16 %v1018, %v1018
          %v1035 = vpack.c.b16 %v1019, %v1019
          %v1036 = vpack.c.b16 %v1020, %v1020
          %v1037 = vpack.c.b16 %v1021, %v1021
          %v1038 = vpack.c.b16 %v1022, %v1022
          %v1039 = vpack.c.b16 %v1023, %v1023
          %v1040 = vpack.c.b16 %v1024, %v1024
          %s1057 = sshra.s32 %s1000, 3
          %s1058 = sand.u32 %s1000, 7
          %s1059 = smul.addr %s1057, 4
          %s1060 = scalar_lea.vmem [#allocation2], %s1059
          %1061 = vst.msk [vmem:[%s1060] sm:$0xf] %vm983, %v1025
          %1062 = vst.msk [vmem:[%s1060 + $0x4] sm:$0xf] %vm983, %v1026
          %1063 = vst.msk [vmem:[%s1060 + $0x8] sm:$0xf] %vm983, %v1027
          %1064 = vst.msk [vmem:[%s1060 + $0xc] sm:$0xf] %vm983, %v1028
          %1065 = vst.msk [vmem:[%s1060 + $0x10] sm:$0xf] %vm983, %v1029
          %1066 = vst.msk [vmem:[%s1060 + $0x14] sm:$0xf] %vm983, %v1030
          %1067 = vst.msk [vmem:[%s1060 + $0x18] sm:$0xf] %vm983, %v1031
          %1068 = vst.msk [vmem:[%s1060 + $0x1c] sm:$0xf] %vm983, %v1032
          %1069 = vst.msk [vmem:[%s1060 + $0x20] sm:$0xf] %vm983, %v1033
          %1070 = vst.msk [vmem:[%s1060 + $0x24] sm:$0xf] %vm983, %v1034
          %1071 = vst.msk [vmem:[%s1060 + $0x28] sm:$0xf] %vm983, %v1035
          %1072 = vst.msk [vmem:[%s1060 + $0x2c] sm:$0xf] %vm983, %v1036
          %1073 = vst.msk [vmem:[%s1060 + $0x30] sm:$0xf] %vm983, %v1037
          %1074 = vst.msk [vmem:[%s1060 + $0x34] sm:$0xf] %vm983, %v1038
          %1075 = vst.msk [vmem:[%s1060 + $0x38] sm:$0xf] %vm983, %v1039
          %1076 = vst.msk [vmem:[%s1060 + $0x3c] sm:$0xf] %vm983, %v1040
        $region56: #{_kipfnet_pallas.1} parent=43 // pred_fallthru
          _
        %p1077 = scmp.ge.s32.totalorder %s26, 1
        %p1078 = scmp.lt.s32.totalorder %s26, 7
        %p1079 = pnand %p1077, %p1078
        %p1080 = pneg %p1079
        // Predicated region
        $region57: #{_kipfnet_pallas.1} parent=43 // pred_check
          _
        $region58: #{_kipfnet_pallas.1} parent=43 // pred_check_branch
          %1082 = sbr.rel (%p1079) target = $region60
        $region59: #{_kipfnet_pallas.1} parent=43 // pred_region
          %s1083 = sadd.s32 %s26, 1
          %p1084 = scmp.lt.s32.totalorder %s26, 0
          %s1085 = ssub.s32 0, %s26
          %s1086 = scalar_select %p1084, %s1085, %s26
          %s1087 = sand.u32 %s1086, 1
          %s1088 = ssub.s32 0, %s1087
          %s1089 = scalar_select %p1084, %s1088, %s1087
          %p1090 = scmp.ne.s32.totalorder %s1089, 0
          %p1091 = scmp.lt.s32.totalorder %s1089, 0
          %p1092 = pnand %p1091, %p1090
          %p1093 = pneg %p1092
          %s1094 = sadd.s32 %s1089, 2
          %s1095 = scalar_select %p1093, %s1094, %s1089
          %s1096 = smul.u32 %s1095, 256
          %s1097 = ssub.s32 1, %s1095
          %s1098 = smul.u32 %s1097, 256
          %s1099 = sadd.s32 %s1098, %s288
          %s1100 = sshra.s32 %s1096, 3
          %s1101 = sand.u32 %s1096, 7
          %s1102 = smul.addr %s1100, 4
          %s1103 = scalar_lea.vmem [#allocation2], %s1102
          %v1104 = vld [vmem:[%s1103] sm:$0xf]
          %v1105 = vld [vmem:[%s1103 + $0x4] sm:$0xf]
          %v1106 = vld [vmem:[%s1103 + $0x8] sm:$0xf]
          %v1107 = vld [vmem:[%s1103 + $0xc] sm:$0xf]
          %v1108 = vld [vmem:[%s1103 + $0x10] sm:$0xf]
          %v1109 = vld [vmem:[%s1103 + $0x14] sm:$0xf]
          %v1110 = vld [vmem:[%s1103 + $0x18] sm:$0xf]
          %v1111 = vld [vmem:[%s1103 + $0x1c] sm:$0xf]
          %v1112 = vld [vmem:[%s1103 + $0x20] sm:$0xf]
          %v1113 = vld [vmem:[%s1103 + $0x24] sm:$0xf]
          %v1114 = vld [vmem:[%s1103 + $0x28] sm:$0xf]
          %v1115 = vld [vmem:[%s1103 + $0x2c] sm:$0xf]
          %v1116 = vld [vmem:[%s1103 + $0x30] sm:$0xf]
          %v1117 = vld [vmem:[%s1103 + $0x34] sm:$0xf]
          %v1118 = vld [vmem:[%s1103 + $0x38] sm:$0xf]
          %v1119 = vld [vmem:[%s1103 + $0x3c] sm:$0xf]
          %v1120 = vld [vmem:[%s1103 + $0x40] sm:$0xf]
          %v1121 = vld [vmem:[%s1103 + $0x44] sm:$0xf]
          %v1122 = vld [vmem:[%s1103 + $0x48] sm:$0xf]
          %v1123 = vld [vmem:[%s1103 + $0x4c] sm:$0xf]
          %v1124 = vld [vmem:[%s1103 + $0x50] sm:$0xf]
          %v1125 = vld [vmem:[%s1103 + $0x54] sm:$0xf]
          %v1126 = vld [vmem:[%s1103 + $0x58] sm:$0xf]
          %v1127 = vld [vmem:[%s1103 + $0x5c] sm:$0xf]
          %v1128 = vld [vmem:[%s1103 + $0x60] sm:$0xf]
          %v1129 = vld [vmem:[%s1103 + $0x64] sm:$0xf]
          %v1130 = vld [vmem:[%s1103 + $0x68] sm:$0xf]
          %v1131 = vld [vmem:[%s1103 + $0x6c] sm:$0xf]
          %v1132 = vld [vmem:[%s1103 + $0x70] sm:$0xf]
          %v1133 = vld [vmem:[%s1103 + $0x74] sm:$0xf]
          %v1134 = vld [vmem:[%s1103 + $0x78] sm:$0xf]
          %v1135 = vld [vmem:[%s1103 + $0x7c] sm:$0xf]
          %s1136 = sshra.s32 %s1099, 3
          %s1137 = sand.u32 %s1099, 7
          %s1138 = smul.addr %s1136, 4
          %s1139 = scalar_lea.vmem [#allocation2], %s1138
          %v1140 = vld [vmem:[%s1139] sm:$0xf]
          %v1141 = vld [vmem:[%s1139 + $0x4] sm:$0xf]
          %v1142 = vld [vmem:[%s1139 + $0x8] sm:$0xf]
          %v1143 = vld [vmem:[%s1139 + $0xc] sm:$0xf]
          %v1144 = vld [vmem:[%s1139 + $0x10] sm:$0xf]
          %v1145 = vld [vmem:[%s1139 + $0x14] sm:$0xf]
          %v1146 = vld [vmem:[%s1139 + $0x18] sm:$0xf]
          %v1147 = vld [vmem:[%s1139 + $0x1c] sm:$0xf]
          %v1148 = vld [vmem:[%s1139 + $0x20] sm:$0xf]
          %v1149 = vld [vmem:[%s1139 + $0x24] sm:$0xf]
          %v1150 = vld [vmem:[%s1139 + $0x28] sm:$0xf]
          %v1151 = vld [vmem:[%s1139 + $0x2c] sm:$0xf]
          %v1152 = vld [vmem:[%s1139 + $0x30] sm:$0xf]
          %v1153 = vld [vmem:[%s1139 + $0x34] sm:$0xf]
          %v1154 = vld [vmem:[%s1139 + $0x38] sm:$0xf]
          %v1155 = vld [vmem:[%s1139 + $0x3c] sm:$0xf]
          %v1156 = vunpack.c.l.bf16 %v1140
          %v1157 = vunpack.c.l.bf16 %v1141
          %v1158 = vunpack.c.l.bf16 %v1142
          %v1159 = vunpack.c.l.bf16 %v1143
          %v1160 = vunpack.c.l.bf16 %v1144
          %v1161 = vunpack.c.l.bf16 %v1145
          %v1162 = vunpack.c.l.bf16 %v1146
          %v1163 = vunpack.c.l.bf16 %v1147
          %v1164 = vunpack.c.l.bf16 %v1148
          %v1165 = vunpack.c.l.bf16 %v1149
          %v1166 = vunpack.c.l.bf16 %v1150
          %v1167 = vunpack.c.l.bf16 %v1151
          %v1168 = vunpack.c.l.bf16 %v1152
          %v1169 = vunpack.c.l.bf16 %v1153
          %v1170 = vunpack.c.l.bf16 %v1154
          %v1171 = vunpack.c.l.bf16 %v1155
          %v1188 = vunpack.c.l.b16 %v289
          %v1189 = vunpack.c.h.b16 %v289
          %v1190 = vunpack.c.l.b16 %v290
          %v1191 = vunpack.c.h.b16 %v290
          %v1192 = vunpack.c.l.b16 %v291
          %v1193 = vunpack.c.h.b16 %v291
          %v1194 = vunpack.c.l.b16 %v292
          %v1195 = vunpack.c.h.b16 %v292
          %v1196 = vunpack.c.l.b16 %v293
          %v1197 = vunpack.c.h.b16 %v293
          %v1198 = vunpack.c.l.b16 %v294
          %v1199 = vunpack.c.h.b16 %v294
          %v1200 = vunpack.c.l.b16 %v295
          %v1201 = vunpack.c.h.b16 %v295
          %v1202 = vunpack.c.l.b16 %v296
          %v1203 = vunpack.c.h.b16 %v296
          %v1204 = vunpack.c.l.b16 %v297
          %v1205 = vunpack.c.h.b16 %v297
          %v1206 = vunpack.c.l.b16 %v298
          %v1207 = vunpack.c.h.b16 %v298
          %v1208 = vunpack.c.l.b16 %v299
          %v1209 = vunpack.c.h.b16 %v299
          %v1210 = vunpack.c.l.b16 %v300
          %v1211 = vunpack.c.h.b16 %v300
          %v1212 = vunpack.c.l.b16 %v301
          %v1213 = vunpack.c.h.b16 %v301
          %v1214 = vunpack.c.l.b16 %v302
          %v1215 = vunpack.c.h.b16 %v302
          %v1216 = vunpack.c.l.b16 %v303
          %v1217 = vunpack.c.h.b16 %v303
          %v1218 = vunpack.c.l.b16 %v304
          %v1219 = vunpack.c.h.b16 %v304
          %v1220 = vpack.c.b16 %v1190, %v1188
          %v1221 = vpack.c.b16 %v1191, %v1189
          %v1222 = vpack.c.b16 %v1194, %v1192
          %v1223 = vpack.c.b16 %v1195, %v1193
          %v1224 = vpack.c.b16 %v1198, %v1196
          %v1225 = vpack.c.b16 %v1199, %v1197
          %v1226 = vpack.c.b16 %v1202, %v1200
          %v1227 = vpack.c.b16 %v1203, %v1201
          %v1228 = vpack.c.b16 %v1206, %v1204
          %v1229 = vpack.c.b16 %v1207, %v1205
          %v1230 = vpack.c.b16 %v1210, %v1208
          %v1231 = vpack.c.b16 %v1211, %v1209
          %v1232 = vpack.c.b16 %v1214, %v1212
          %v1233 = vpack.c.b16 %v1215, %v1213
          %v1234 = vpack.c.b16 %v1218, %v1216
          %v1235 = vpack.c.b16 %v1219, %v1217
          %v1284 = vunpack.c.l.b16 %v1104
          %v1285 = vunpack.c.l.b16 %v1105
          %v1286 = vunpack.c.l.b16 %v1106
          %v1287 = vunpack.c.l.b16 %v1107
          %v1288 = vunpack.c.l.b16 %v1108
          %v1289 = vunpack.c.l.b16 %v1109
          %v1290 = vunpack.c.l.b16 %v1110
          %v1291 = vunpack.c.l.b16 %v1111
          %v1292 = vunpack.c.l.b16 %v1112
          %v1293 = vunpack.c.l.b16 %v1113
          %v1294 = vunpack.c.l.b16 %v1114
          %v1295 = vunpack.c.l.b16 %v1115
          %v1296 = vunpack.c.l.b16 %v1116
          %v1297 = vunpack.c.l.b16 %v1117
          %v1298 = vunpack.c.l.b16 %v1118
          %v1299 = vunpack.c.l.b16 %v1119
          %v1300 = vunpack.c.l.b16 %v1120
          %v1301 = vunpack.c.l.b16 %v1121
          %v1302 = vunpack.c.l.b16 %v1122
          %v1303 = vunpack.c.l.b16 %v1123
          %v1304 = vunpack.c.l.b16 %v1124
          %v1305 = vunpack.c.l.b16 %v1125
          %v1306 = vunpack.c.l.b16 %v1126
          %v1307 = vunpack.c.l.b16 %v1127
          %v1308 = vunpack.c.l.b16 %v1128
          %v1309 = vunpack.c.l.b16 %v1129
          %v1310 = vunpack.c.l.b16 %v1130
          %v1311 = vunpack.c.l.b16 %v1131
          %v1312 = vunpack.c.l.b16 %v1132
          %v1313 = vunpack.c.l.b16 %v1133
          %v1314 = vunpack.c.l.b16 %v1134
          %v1315 = vunpack.c.l.b16 %v1135
          %v1316 = vpack.c.b16 %v1285, %v1284
          %v1317 = vpack.c.b16 %v1287, %v1286
          %v1318 = vpack.c.b16 %v1289, %v1288
          %v1319 = vpack.c.b16 %v1291, %v1290
          %v1320 = vpack.c.b16 %v1293, %v1292
          %v1321 = vpack.c.b16 %v1295, %v1294
          %v1322 = vpack.c.b16 %v1297, %v1296
          %v1323 = vpack.c.b16 %v1299, %v1298
          %v1324 = vpack.c.b16 %v1301, %v1300
          %v1325 = vpack.c.b16 %v1303, %v1302
          %v1326 = vpack.c.b16 %v1305, %v1304
          %v1327 = vpack.c.b16 %v1307, %v1306
          %v1328 = vpack.c.b16 %v1309, %v1308
          %v1329 = vpack.c.b16 %v1311, %v1310
          %v1330 = vpack.c.b16 %v1313, %v1312
          %v1331 = vpack.c.b16 %v1315, %v1314
          %1348 = vmatprep.subr.bf16.mxu0 0
          %1349 = vmatpush1.bf16.msra.mxu0 %v1323
          %1350 = vmatprep.subr.bf16.mxu0 0
          %1351 = vmatpush1.bf16.msra.mxu0 %v1322
          %1352 = vmatprep.subr.bf16.mxu0 0
          %1353 = vmatpush1.bf16.msra.mxu0 %v1321
          %1354 = vmatprep.subr.bf16.mxu0 0
          %1355 = vmatpush1.bf16.msra.mxu0 %v1320
          %1356 = vmatprep.subr.bf16.mxu0 0
          %1357 = vmatpush1.bf16.msra.mxu0 %v1319
          %1358 = vmatprep.subr.bf16.mxu0 0
          %1359 = vmatpush1.bf16.msra.mxu0 %v1318
          %1360 = vmatprep.subr.bf16.mxu0 0
          %1361 = vmatpush1.bf16.msra.mxu0 %v1317
          %1362 = vmatprep.subr.bf16.mxu0 0
          %1363 = vmatpush1.bf16.msra.mxu0 %v1316
          %1364 = vmatprep.subr.bf16.mxu0 0
          %1365 = vmatpush2.bf16.msra.mxu0 %v1331
          %1366 = vmatprep.subr.bf16.mxu0 0
          %1367 = vmatpush2.bf16.msra.mxu0 %v1330
          %1368 = vmatprep.subr.bf16.mxu0 0
          %1369 = vmatpush2.bf16.msra.mxu0 %v1329
          %1370 = vmatprep.subr.bf16.mxu0 0
          %1371 = vmatpush2.bf16.msra.mxu0 %v1328
          %1372 = vmatprep.subr.bf16.mxu0 0
          %1373 = vmatpush2.bf16.msra.mxu0 %v1327
          %1374 = vmatprep.subr.bf16.mxu0 0
          %1375 = vmatpush2.bf16.msra.mxu0 %v1326
          %1376 = vmatprep.subr.bf16.mxu0 0
          %1377 = vmatpush2.bf16.msra.mxu0 %v1325
          %1378 = vmatprep.subr.bf16.mxu0 0
          %1379 = vmatpush2.bf16.msra.mxu0 %v1324
          %1380 = vmatprep.mubr.bf16.mxu0 %v1221
          %1381 = vmatmul.mubr.bf16.gmra.mxu0 %v1220
          %v1382 = vpop.f32.mrf.mxu0
          %v1383 = vadd.f32 0.0, %v1382
          %v1384 = vpop.f32.mrf.mxu0
          %v1385 = vpop.f32.mrf.mxu0
          %v1386 = vadd.f32 0.0, %v1385
          %v1387 = vpop.f32.mrf.mxu0
          %1388 = vmatprep.mubr.bf16.mxu0 %v1223
          %1389 = vmatmul.mubr.bf16.gmra.mxu0 %v1222
          %v1390 = vpop.f32.mrf.mxu0
          %v1391 = vadd.f32 0.0, %v1390
          %v1392 = vpop.f32.mrf.mxu0
          %v1393 = vpop.f32.mrf.mxu0
          %v1394 = vadd.f32 0.0, %v1393
          %v1395 = vpop.f32.mrf.mxu0
          %1396 = vmatprep.mubr.bf16.mxu0 %v1225
          %1397 = vmatmul.mubr.bf16.gmra.mxu0 %v1224
          %v1398 = vpop.f32.mrf.mxu0
          %v1399 = vadd.f32 0.0, %v1398
          %v1400 = vpop.f32.mrf.mxu0
          %v1401 = vpop.f32.mrf.mxu0
          %v1402 = vadd.f32 0.0, %v1401
          %v1403 = vpop.f32.mrf.mxu0
          %1404 = vmatprep.mubr.bf16.mxu0 %v1227
          %1405 = vmatmul.mubr.bf16.gmra.mxu0 %v1226
          %v1406 = vpop.f32.mrf.mxu0
          %v1407 = vadd.f32 0.0, %v1406
          %v1408 = vpop.f32.mrf.mxu0
          %v1409 = vpop.f32.mrf.mxu0
          %v1410 = vadd.f32 0.0, %v1409
          %v1411 = vpop.f32.mrf.mxu0
          %1412 = vmatprep.mubr.bf16.mxu0 %v1229
          %1413 = vmatmul.mubr.bf16.gmra.mxu0 %v1228
          %v1414 = vpop.f32.mrf.mxu0
          %v1415 = vadd.f32 0.0, %v1414
          %v1416 = vpop.f32.mrf.mxu0
          %v1417 = vpop.f32.mrf.mxu0
          %v1418 = vadd.f32 0.0, %v1417
          %v1419 = vpop.f32.mrf.mxu0
          %1420 = vmatprep.mubr.bf16.mxu0 %v1231
          %1421 = vmatmul.mubr.bf16.gmra.mxu0 %v1230
          %v1422 = vpop.f32.mrf.mxu0
          %v1423 = vadd.f32 0.0, %v1422
          %v1424 = vpop.f32.mrf.mxu0
          %v1425 = vpop.f32.mrf.mxu0
          %v1426 = vadd.f32 0.0, %v1425
          %v1427 = vpop.f32.mrf.mxu0
          %1428 = vmatprep.mubr.bf16.mxu0 %v1233
          %1429 = vmatmul.mubr.bf16.gmra.mxu0 %v1232
          %v1430 = vpop.f32.mrf.mxu0
          %v1431 = vadd.f32 0.0, %v1430
          %v1432 = vpop.f32.mrf.mxu0
          %v1433 = vpop.f32.mrf.mxu0
          %v1434 = vadd.f32 0.0, %v1433
          %v1435 = vpop.f32.mrf.mxu0
          %1436 = vmatprep.mubr.bf16.mxu0 %v1235
          %1437 = vmatmul.mubr.bf16.gmra.mxu0 %v1234
          %v1438 = vpop.f32.mrf.mxu0
          %v1439 = vadd.f32 0.0, %v1438
          %v1440 = vpop.f32.mrf.mxu0
          %v1441 = vpop.f32.mrf.mxu0
          %v1442 = vadd.f32 0.0, %v1441
          %v1443 = vpop.f32.mrf.mxu0
          %1444 = vdwg.mxu0
          %v1445 = vmul.f32 %v1383, 2.0
          %v1446 = vmul.f32 %v1386, 2.0
          %v1447 = vmul.f32 %v1391, 2.0
          %v1448 = vmul.f32 %v1394, 2.0
          %v1449 = vmul.f32 %v1399, 2.0
          %v1450 = vmul.f32 %v1402, 2.0
          %v1451 = vmul.f32 %v1407, 2.0
          %v1452 = vmul.f32 %v1410, 2.0
          %v1453 = vmul.f32 %v1415, 2.0
          %v1454 = vmul.f32 %v1418, 2.0
          %v1455 = vmul.f32 %v1423, 2.0
          %v1456 = vmul.f32 %v1426, 2.0
          %v1457 = vmul.f32 %v1431, 2.0
          %v1458 = vmul.f32 %v1434, 2.0
          %v1459 = vmul.f32 %v1439, 2.0
          %v1460 = vmul.f32 %v1442, 2.0
          %v1461 = vsub.f32 %v1445, %v1156
          %v1462 = vsub.f32 %v1446, %v1157
          %v1463 = vsub.f32 %v1447, %v1158
          %v1464 = vsub.f32 %v1448, %v1159
          %v1465 = vsub.f32 %v1449, %v1160
          %v1466 = vsub.f32 %v1450, %v1161
          %v1467 = vsub.f32 %v1451, %v1162
          %v1468 = vsub.f32 %v1452, %v1163
          %v1469 = vsub.f32 %v1453, %v1164
          %v1470 = vsub.f32 %v1454, %v1165
          %v1471 = vsub.f32 %v1455, %v1166
          %v1472 = vsub.f32 %v1456, %v1167
          %v1473 = vsub.f32 %v1457, %v1168
          %v1474 = vsub.f32 %v1458, %v1169
          %v1475 = vsub.f32 %v1459, %v1170
          %v1476 = vsub.f32 %v1460, %v1171
          %v1477 = vpack.c.bf16 %v1462, %v1461
          %v1478 = vpack.c.bf16 %v1464, %v1463
          %v1479 = vpack.c.bf16 %v1466, %v1465
          %v1480 = vpack.c.bf16 %v1468, %v1467
          %v1481 = vpack.c.bf16 %v1470, %v1469
          %v1482 = vpack.c.bf16 %v1472, %v1471
          %v1483 = vpack.c.bf16 %v1474, %v1473
          %v1484 = vpack.c.bf16 %v1476, %v1475
          %v1493 = vunpack.c.l.b16 %v1477
          %v1494 = vunpack.c.h.b16 %v1477
          %v1495 = vunpack.c.l.b16 %v1478
          %v1496 = vunpack.c.h.b16 %v1478
          %v1497 = vunpack.c.l.b16 %v1479
          %v1498 = vunpack.c.h.b16 %v1479
          %v1499 = vunpack.c.l.b16 %v1480
          %v1500 = vunpack.c.h.b16 %v1480
          %v1501 = vunpack.c.l.b16 %v1481
          %v1502 = vunpack.c.h.b16 %v1481
          %v1503 = vunpack.c.l.b16 %v1482
          %v1504 = vunpack.c.h.b16 %v1482
          %v1505 = vunpack.c.l.b16 %v1483
          %v1506 = vunpack.c.h.b16 %v1483
          %v1507 = vunpack.c.l.b16 %v1484
          %v1508 = vunpack.c.h.b16 %v1484
          %v1509 = vpack.c.b16 %v1493, %v1493
          %v1510 = vpack.c.b16 %v1494, %v1494
          %v1511 = vpack.c.b16 %v1495, %v1495
          %v1512 = vpack.c.b16 %v1496, %v1496
          %v1513 = vpack.c.b16 %v1497, %v1497
          %v1514 = vpack.c.b16 %v1498, %v1498
          %v1515 = vpack.c.b16 %v1499, %v1499
          %v1516 = vpack.c.b16 %v1500, %v1500
          %v1517 = vpack.c.b16 %v1501, %v1501
          %v1518 = vpack.c.b16 %v1502, %v1502
          %v1519 = vpack.c.b16 %v1503, %v1503
          %v1520 = vpack.c.b16 %v1504, %v1504
          %v1521 = vpack.c.b16 %v1505, %v1505
          %v1522 = vpack.c.b16 %v1506, %v1506
          %v1523 = vpack.c.b16 %v1507, %v1507
          %v1524 = vpack.c.b16 %v1508, %v1508
          %vm1541 = vcmask 125952
          %1542 = vst.msk [vmem:[%s1139] sm:$0xf] %vm1541, %v1509
          %1543 = vst.msk [vmem:[%s1139 + $0x4] sm:$0xf] %vm1541, %v1510
          %1544 = vst.msk [vmem:[%s1139 + $0x8] sm:$0xf] %vm1541, %v1511
          %1545 = vst.msk [vmem:[%s1139 + $0xc] sm:$0xf] %vm1541, %v1512
          %1546 = vst.msk [vmem:[%s1139 + $0x10] sm:$0xf] %vm1541, %v1513
          %1547 = vst.msk [vmem:[%s1139 + $0x14] sm:$0xf] %vm1541, %v1514
          %1548 = vst.msk [vmem:[%s1139 + $0x18] sm:$0xf] %vm1541, %v1515
          %1549 = vst.msk [vmem:[%s1139 + $0x1c] sm:$0xf] %vm1541, %v1516
          %1550 = vst.msk [vmem:[%s1139 + $0x20] sm:$0xf] %vm1541, %v1517
          %1551 = vst.msk [vmem:[%s1139 + $0x24] sm:$0xf] %vm1541, %v1518
          %1552 = vst.msk [vmem:[%s1139 + $0x28] sm:$0xf] %vm1541, %v1519
          %1553 = vst.msk [vmem:[%s1139 + $0x2c] sm:$0xf] %vm1541, %v1520
          %1554 = vst.msk [vmem:[%s1139 + $0x30] sm:$0xf] %vm1541, %v1521
          %1555 = vst.msk [vmem:[%s1139 + $0x34] sm:$0xf] %vm1541, %v1522
          %1556 = vst.msk [vmem:[%s1139 + $0x38] sm:$0xf] %vm1541, %v1523
          %1557 = vst.msk [vmem:[%s1139 + $0x3c] sm:$0xf] %vm1541, %v1524
          %s1558 = smul.u32 %s1083, 16
          %s1559 = sshra.s32 %s1558, 3
          %s1560 = sand.u32 %s1558, 7
          %s1561 = smul.addr %s1559, 4
          %s1562 = scalar_lea.vmem [#allocation8], %s1561
          %v1563 = vld [vmem:[%s1562] sm:$0xf]
          %v1564 = vld [vmem:[%s1562 + $0x4] sm:$0xf]
          %s1565 = scalar_lea.vmem [#allocation3], %s288
          %v1566 = vld [vmem:[%s1565] sm:$0xff]
          %v1567 = vld [vmem:[%s1565 + $0x8] sm:$0xff]
          %v1568 = vld [vmem:[%s1565 + $0x10] sm:$0xff]
          %v1569 = vld [vmem:[%s1565 + $0x18] sm:$0xff]
          %v1570 = vld [vmem:[%s1565 + $0x20] sm:$0xff]
          %v1571 = vld [vmem:[%s1565 + $0x28] sm:$0xff]
          %v1572 = vld [vmem:[%s1565 + $0x30] sm:$0xff]
          %v1573 = vld [vmem:[%s1565 + $0x38] sm:$0xff]
          %v1574 = vld [vmem:[%s1565 + $0x40] sm:$0xff]
          %v1575 = vld [vmem:[%s1565 + $0x48] sm:$0xff]
          %v1576 = vld [vmem:[%s1565 + $0x50] sm:$0xff]
          %v1577 = vld [vmem:[%s1565 + $0x58] sm:$0xff]
          %v1578 = vld [vmem:[%s1565 + $0x60] sm:$0xff]
          %v1579 = vld [vmem:[%s1565 + $0x68] sm:$0xff]
          %v1580 = vld [vmem:[%s1565 + $0x70] sm:$0xff]
          %v1581 = vld [vmem:[%s1565 + $0x78] sm:$0xff]
          %v1584 = vunpack.c.l.b16 %v1563
          %v1585 = vunpack.c.l.b16 %v1564
          %v1586 = vpack.c.b16 %v1585, %v1584
          %vm1588 = vcmask 130048
          %v1590 = vsel %vm1588, %v1477, 0
          %v1593 = vsel %vm1588, %v1478, 0
          %v1596 = vsel %vm1588, %v1479, 0
          %v1599 = vsel %vm1588, %v1480, 0
          %v1602 = vsel %vm1588, %v1481, 0
          %v1605 = vsel %vm1588, %v1482, 0
          %v1608 = vsel %vm1588, %v1483, 0
          %v1611 = vsel %vm1588, %v1484, 0
          %1613 = vmatprep.subr.bf16.mxu0 0
          %1614 = vmatpush1.bf16.msra.mxu0 0
          %1615 = vmatprep.subr.bf16.mxu0 0
          %1616 = vmatpush1.bf16.msra.mxu0 0
          %1617 = vmatprep.subr.bf16.mxu0 0
          %1618 = vmatpush1.bf16.msra.mxu0 0
          %1619 = vmatprep.subr.bf16.mxu0 0
          %1620 = vmatpush1.bf16.msra.mxu0 0
          %1621 = vmatprep.subr.bf16.mxu0 0
          %1622 = vmatpush1.bf16.msra.mxu0 0
          %1623 = vmatprep.subr.bf16.mxu0 0
          %1624 = vmatpush1.bf16.msra.mxu0 0
          %1625 = vmatprep.subr.bf16.mxu0 0
          %1626 = vmatpush1.bf16.msra.mxu0 0
          %1627 = vmatprep.subr.bf16.mxu0 0
          %1628 = vmatpush1.bf16.msra.mxu0 %v1586
          %1629 = vmatprep.subr.bf16.mxu0 0
          %1630 = vmatpush2.bf16.msra.mxu0 0
          %1631 = vmatprep.subr.bf16.mxu0 0
          %1632 = vmatpush2.bf16.msra.mxu0 0
          %1633 = vmatprep.subr.bf16.mxu0 0
          %1634 = vmatpush2.bf16.msra.mxu0 0
          %1635 = vmatprep.subr.bf16.mxu0 0
          %1636 = vmatpush2.bf16.msra.mxu0 0
          %1637 = vmatprep.subr.bf16.mxu0 0
          %1638 = vmatpush2.bf16.msra.mxu0 0
          %1639 = vmatprep.subr.bf16.mxu0 0
          %1640 = vmatpush2.bf16.msra.mxu0 0
          %1641 = vmatprep.subr.bf16.mxu0 0
          %1642 = vmatpush2.bf16.msra.mxu0 0
          %1643 = vmatprep.subr.bf16.mxu0 0
          %1644 = vmatpush2.bf16.msra.mxu0 0
          %1645 = vmatprep.mubr.bf16.mxu0 0
          %1646 = vmatmul.mubr.bf16.gmra.mxu0 %v1590
          %v1647 = vpop.f32.mrf.mxu0
          %v1648 = vadd.f32 0.0, %v1647
          %v1649 = vpop.f32.mrf.mxu0
          %v1650 = vpop.f32.mrf.mxu0
          %v1651 = vadd.f32 0.0, %v1650
          %v1652 = vpop.f32.mrf.mxu0
          %1653 = vmatprep.mubr.bf16.mxu0 0
          %1654 = vmatmul.mubr.bf16.gmra.mxu0 %v1593
          %v1655 = vpop.f32.mrf.mxu0
          %v1656 = vadd.f32 0.0, %v1655
          %v1657 = vpop.f32.mrf.mxu0
          %v1658 = vpop.f32.mrf.mxu0
          %v1659 = vadd.f32 0.0, %v1658
          %v1660 = vpop.f32.mrf.mxu0
          %1661 = vmatprep.mubr.bf16.mxu0 0
          %1662 = vmatmul.mubr.bf16.gmra.mxu0 %v1596
          %v1663 = vpop.f32.mrf.mxu0
          %v1664 = vadd.f32 0.0, %v1663
          %v1665 = vpop.f32.mrf.mxu0
          %v1666 = vpop.f32.mrf.mxu0
          %v1667 = vadd.f32 0.0, %v1666
          %v1668 = vpop.f32.mrf.mxu0
          %1669 = vmatprep.mubr.bf16.mxu0 0
          %1670 = vmatmul.mubr.bf16.gmra.mxu0 %v1599
          %v1671 = vpop.f32.mrf.mxu0
          %v1672 = vadd.f32 0.0, %v1671
          %v1673 = vpop.f32.mrf.mxu0
          %v1674 = vpop.f32.mrf.mxu0
          %v1675 = vadd.f32 0.0, %v1674
          %v1676 = vpop.f32.mrf.mxu0
          %1677 = vmatprep.mubr.bf16.mxu0 0
          %1678 = vmatmul.mubr.bf16.gmra.mxu0 %v1602
          %v1679 = vpop.f32.mrf.mxu0
          %v1680 = vadd.f32 0.0, %v1679
          %v1681 = vpop.f32.mrf.mxu0
          %v1682 = vpop.f32.mrf.mxu0
          %v1683 = vadd.f32 0.0, %v1682
          %v1684 = vpop.f32.mrf.mxu0
          %1685 = vmatprep.mubr.bf16.mxu0 0
          %1686 = vmatmul.mubr.bf16.gmra.mxu0 %v1605
          %v1687 = vpop.f32.mrf.mxu0
          %v1688 = vadd.f32 0.0, %v1687
          %v1689 = vpop.f32.mrf.mxu0
          %v1690 = vpop.f32.mrf.mxu0
          %v1691 = vadd.f32 0.0, %v1690
          %v1692 = vpop.f32.mrf.mxu0
          %1693 = vmatprep.mubr.bf16.mxu0 0
          %1694 = vmatmul.mubr.bf16.gmra.mxu0 %v1608
          %v1695 = vpop.f32.mrf.mxu0
          %v1696 = vadd.f32 0.0, %v1695
          %v1697 = vpop.f32.mrf.mxu0
          %v1698 = vpop.f32.mrf.mxu0
          %v1699 = vadd.f32 0.0, %v1698
          %v1700 = vpop.f32.mrf.mxu0
          %1701 = vmatprep.mubr.bf16.mxu0 0
          %1702 = vmatmul.mubr.bf16.gmra.mxu0 %v1611
          %v1703 = vpop.f32.mrf.mxu0
          %v1704 = vadd.f32 0.0, %v1703
          %v1705 = vpop.f32.mrf.mxu0
          %v1706 = vpop.f32.mrf.mxu0
          %v1707 = vadd.f32 0.0, %v1706
          %v1708 = vpop.f32.mrf.mxu0
          %1709 = vdwg.mxu0
          %v1710 = vadd.f32 %v1566, %v1648
          %v1711 = vadd.f32 %v1567, %v1651
          %v1712 = vadd.f32 %v1568, %v1656
          %v1713 = vadd.f32 %v1569, %v1659
          %v1714 = vadd.f32 %v1570, %v1664
          %v1715 = vadd.f32 %v1571, %v1667
          %v1716 = vadd.f32 %v1572, %v1672
          %v1717 = vadd.f32 %v1573, %v1675
          %v1718 = vadd.f32 %v1574, %v1680
          %v1719 = vadd.f32 %v1575, %v1683
          %v1720 = vadd.f32 %v1576, %v1688
          %v1721 = vadd.f32 %v1577, %v1691
          %v1722 = vadd.f32 %v1578, %v1696
          %v1723 = vadd.f32 %v1579, %v1699
          %v1724 = vadd.f32 %v1580, %v1704
          %v1725 = vadd.f32 %v1581, %v1707
          %1726 = vst [vmem:[%s1565] sm:$0xff] %v1710
          %1727 = vst [vmem:[%s1565 + $0x8] sm:$0xff] %v1711
          %1728 = vst [vmem:[%s1565 + $0x10] sm:$0xff] %v1712
          %1729 = vst [vmem:[%s1565 + $0x18] sm:$0xff] %v1713
          %1730 = vst [vmem:[%s1565 + $0x20] sm:$0xff] %v1714
          %1731 = vst [vmem:[%s1565 + $0x28] sm:$0xff] %v1715
          %1732 = vst [vmem:[%s1565 + $0x30] sm:$0xff] %v1716
          %1733 = vst [vmem:[%s1565 + $0x38] sm:$0xff] %v1717
          %1734 = vst [vmem:[%s1565 + $0x40] sm:$0xff] %v1718
          %1735 = vst [vmem:[%s1565 + $0x48] sm:$0xff] %v1719
          %1736 = vst [vmem:[%s1565 + $0x50] sm:$0xff] %v1720
          %1737 = vst [vmem:[%s1565 + $0x58] sm:$0xff] %v1721
          %1738 = vst [vmem:[%s1565 + $0x60] sm:$0xff] %v1722
          %1739 = vst [vmem:[%s1565 + $0x68] sm:$0xff] %v1723
          %1740 = vst [vmem:[%s1565 + $0x70] sm:$0xff] %v1724
          %1741 = vst [vmem:[%s1565 + $0x78] sm:$0xff] %v1725
        $region60: #{_kipfnet_pallas.1} parent=43 // pred_fallthru
          _
        %p1742 = scmp.eq.s32.totalorder %s26, 6
        // Predicated region
        $region61: #{_kipfnet_pallas.1} parent=43 // pred_check
          %p1743 = pneg %p1742
        $region62: #{_kipfnet_pallas.1} parent=43 // pred_check_branch
          %1745 = sbr.rel (%p1743) target = $region64
        $region63: #{_kipfnet_pallas.1} parent=43 // pred_region
          %s1746 = scalar_lea.vmem [#allocation3], %s288
          %v1747 = vld [vmem:[%s1746] sm:$0xff]
          %v1748 = vld [vmem:[%s1746 + $0x8] sm:$0xff]
          %v1749 = vld [vmem:[%s1746 + $0x10] sm:$0xff]
          %v1750 = vld [vmem:[%s1746 + $0x18] sm:$0xff]
          %v1751 = vld [vmem:[%s1746 + $0x20] sm:$0xff]
          %v1752 = vld [vmem:[%s1746 + $0x28] sm:$0xff]
          %v1753 = vld [vmem:[%s1746 + $0x30] sm:$0xff]
          %v1754 = vld [vmem:[%s1746 + $0x38] sm:$0xff]
          %v1755 = vld [vmem:[%s1746 + $0x40] sm:$0xff]
          %v1756 = vld [vmem:[%s1746 + $0x48] sm:$0xff]
          %v1757 = vld [vmem:[%s1746 + $0x50] sm:$0xff]
          %v1758 = vld [vmem:[%s1746 + $0x58] sm:$0xff]
          %v1759 = vld [vmem:[%s1746 + $0x60] sm:$0xff]
          %v1760 = vld [vmem:[%s1746 + $0x68] sm:$0xff]
          %v1761 = vld [vmem:[%s1746 + $0x70] sm:$0xff]
          %v1762 = vld [vmem:[%s1746 + $0x78] sm:$0xff]
          %v1763 = vmax.f32 %v1747, 0.0
          %v1764 = vmax.f32 %v1748, 0.0
          %v1765 = vmax.f32 %v1749, 0.0
          %v1766 = vmax.f32 %v1750, 0.0
          %v1767 = vmax.f32 %v1751, 0.0
          %v1768 = vmax.f32 %v1752, 0.0
          %v1769 = vmax.f32 %v1753, 0.0
          %v1770 = vmax.f32 %v1754, 0.0
          %v1771 = vmax.f32 %v1755, 0.0
          %v1772 = vmax.f32 %v1756, 0.0
          %v1773 = vmax.f32 %v1757, 0.0
          %v1774 = vmax.f32 %v1758, 0.0
          %v1775 = vmax.f32 %v1759, 0.0
          %v1776 = vmax.f32 %v1760, 0.0
          %v1777 = vmax.f32 %v1761, 0.0
          %v1778 = vmax.f32 %v1762, 0.0
          %v1779 = vpack.c.bf16 %v1764, %v1763
          %v1780 = vpack.c.bf16 %v1766, %v1765
          %v1781 = vpack.c.bf16 %v1768, %v1767
          %v1782 = vpack.c.bf16 %v1770, %v1769
          %v1783 = vpack.c.bf16 %v1772, %v1771
          %v1784 = vpack.c.bf16 %v1774, %v1773
          %v1785 = vpack.c.bf16 %v1776, %v1775
          %v1786 = vpack.c.bf16 %v1778, %v1777
          %v1795 = vunpack.c.l.b16 %v1779
          %v1796 = vunpack.c.h.b16 %v1779
          %v1797 = vunpack.c.l.b16 %v1780
          %v1798 = vunpack.c.h.b16 %v1780
          %v1799 = vunpack.c.l.b16 %v1781
          %v1800 = vunpack.c.h.b16 %v1781
          %v1801 = vunpack.c.l.b16 %v1782
          %v1802 = vunpack.c.h.b16 %v1782
          %v1803 = vunpack.c.l.b16 %v1783
          %v1804 = vunpack.c.h.b16 %v1783
          %v1805 = vunpack.c.l.b16 %v1784
          %v1806 = vunpack.c.h.b16 %v1784
          %v1807 = vunpack.c.l.b16 %v1785
          %v1808 = vunpack.c.h.b16 %v1785
          %v1809 = vunpack.c.l.b16 %v1786
          %v1810 = vunpack.c.h.b16 %v1786
          %v1811 = vpack.c.b16 %v1795, %v1795
          %v1812 = vpack.c.b16 %v1796, %v1796
          %v1813 = vpack.c.b16 %v1797, %v1797
          %v1814 = vpack.c.b16 %v1798, %v1798
          %v1815 = vpack.c.b16 %v1799, %v1799
          %v1816 = vpack.c.b16 %v1800, %v1800
          %v1817 = vpack.c.b16 %v1801, %v1801
          %v1818 = vpack.c.b16 %v1802, %v1802
          %v1819 = vpack.c.b16 %v1803, %v1803
          %v1820 = vpack.c.b16 %v1804, %v1804
          %v1821 = vpack.c.b16 %v1805, %v1805
          %v1822 = vpack.c.b16 %v1806, %v1806
          %v1823 = vpack.c.b16 %v1807, %v1807
          %v1824 = vpack.c.b16 %v1808, %v1808
          %v1825 = vpack.c.b16 %v1809, %v1809
          %v1826 = vpack.c.b16 %v1810, %v1810
          %s1843 = sshra.s32 %s288, 3
          %s1844 = sand.u32 %s288, 7
          %s1845 = smul.addr %s1843, 4
          %s1846 = scalar_lea.vmem [#allocation4], %s1845
          %1847 = vst [vmem:[%s1846] sm:$0xf] %v1811
          %1848 = vst [vmem:[%s1846 + $0x4] sm:$0xf] %v1812
          %1849 = vst [vmem:[%s1846 + $0x8] sm:$0xf] %v1813
          %1850 = vst [vmem:[%s1846 + $0xc] sm:$0xf] %v1814
          %1851 = vst [vmem:[%s1846 + $0x10] sm:$0xf] %v1815
          %1852 = vst [vmem:[%s1846 + $0x14] sm:$0xf] %v1816
          %1853 = vst [vmem:[%s1846 + $0x18] sm:$0xf] %v1817
          %1854 = vst [vmem:[%s1846 + $0x1c] sm:$0xf] %v1818
          %1855 = vst [vmem:[%s1846 + $0x20] sm:$0xf] %v1819
          %1856 = vst [vmem:[%s1846 + $0x24] sm:$0xf] %v1820
          %1857 = vst [vmem:[%s1846 + $0x28] sm:$0xf] %v1821
          %1858 = vst [vmem:[%s1846 + $0x2c] sm:$0xf] %v1822
          %1859 = vst [vmem:[%s1846 + $0x30] sm:$0xf] %v1823
          %1860 = vst [vmem:[%s1846 + $0x34] sm:$0xf] %v1824
          %1861 = vst [vmem:[%s1846 + $0x38] sm:$0xf] %v1825
          %1862 = vst [vmem:[%s1846 + $0x3c] sm:$0xf] %v1826
        $region64: #{_kipfnet_pallas.1} parent=43 // pred_fallthru
          _
        %p1863 = scmp.eq.s32.totalorder %s26, 7
        // Predicated region
        $region65: #{_kipfnet_pallas.1} parent=43 // pred_check
          %p1864 = pneg %p1863
        $region66: #{_kipfnet_pallas.1} parent=43 // pred_check_branch
          %1866 = sbr.rel (%p1864) target = $region68
        $region67: #{_kipfnet_pallas.1} parent=43 // pred_region
          %s1867 = sshra.s32 %s288, 3
          %s1868 = sand.u32 %s288, 7
          %s1869 = smul.addr %s1867, 4
          %s1870 = scalar_lea.vmem [#allocation4], %s1869
          %v1871 = vld [vmem:[%s1870] sm:$0xf]
          %v1872 = vld [vmem:[%s1870 + $0x4] sm:$0xf]
          %v1873 = vld [vmem:[%s1870 + $0x8] sm:$0xf]
          %v1874 = vld [vmem:[%s1870 + $0xc] sm:$0xf]
          %v1875 = vld [vmem:[%s1870 + $0x10] sm:$0xf]
          %v1876 = vld [vmem:[%s1870 + $0x14] sm:$0xf]
          %v1877 = vld [vmem:[%s1870 + $0x18] sm:$0xf]
          %v1878 = vld [vmem:[%s1870 + $0x1c] sm:$0xf]
          %v1879 = vld [vmem:[%s1870 + $0x20] sm:$0xf]
          %v1880 = vld [vmem:[%s1870 + $0x24] sm:$0xf]
          %v1881 = vld [vmem:[%s1870 + $0x28] sm:$0xf]
          %v1882 = vld [vmem:[%s1870 + $0x2c] sm:$0xf]
          %v1883 = vld [vmem:[%s1870 + $0x30] sm:$0xf]
          %v1884 = vld [vmem:[%s1870 + $0x34] sm:$0xf]
          %v1885 = vld [vmem:[%s1870 + $0x38] sm:$0xf]
          %v1886 = vld [vmem:[%s1870 + $0x3c] sm:$0xf]
          %v1887 = vld [vmem:[#allocation4] sm:$0xf]
          %v1888 = vld [vmem:[#allocation4 + $0x4] sm:$0xf]
          %v1889 = vld [vmem:[#allocation4 + $0x8] sm:$0xf]
          %v1890 = vld [vmem:[#allocation4 + $0xc] sm:$0xf]
          %v1891 = vld [vmem:[#allocation4 + $0x10] sm:$0xf]
          %v1892 = vld [vmem:[#allocation4 + $0x14] sm:$0xf]
          %v1893 = vld [vmem:[#allocation4 + $0x18] sm:$0xf]
          %v1894 = vld [vmem:[#allocation4 + $0x1c] sm:$0xf]
          %v1895 = vld [vmem:[#allocation4 + $0x20] sm:$0xf]
          %v1896 = vld [vmem:[#allocation4 + $0x24] sm:$0xf]
          %v1897 = vld [vmem:[#allocation4 + $0x28] sm:$0xf]
          %v1898 = vld [vmem:[#allocation4 + $0x2c] sm:$0xf]
          %v1899 = vld [vmem:[#allocation4 + $0x30] sm:$0xf]
          %v1900 = vld [vmem:[#allocation4 + $0x34] sm:$0xf]
          %v1901 = vld [vmem:[#allocation4 + $0x38] sm:$0xf]
          %v1902 = vld [vmem:[#allocation4 + $0x3c] sm:$0xf]
          %v1903 = vld [vmem:[#allocation4 + $0x40] sm:$0xf]
          %v1904 = vld [vmem:[#allocation4 + $0x44] sm:$0xf]
          %v1905 = vld [vmem:[#allocation4 + $0x48] sm:$0xf]
          %v1906 = vld [vmem:[#allocation4 + $0x4c] sm:$0xf]
          %v1907 = vld [vmem:[#allocation4 + $0x50] sm:$0xf]
          %v1908 = vld [vmem:[#allocation4 + $0x54] sm:$0xf]
          %v1909 = vld [vmem:[#allocation4 + $0x58] sm:$0xf]
          %v1910 = vld [vmem:[#allocation4 + $0x5c] sm:$0xf]
          %v1911 = vld [vmem:[#allocation4 + $0x60] sm:$0xf]
          %v1912 = vld [vmem:[#allocation4 + $0x64] sm:$0xf]
          %v1913 = vld [vmem:[#allocation4 + $0x68] sm:$0xf]
          %v1914 = vld [vmem:[#allocation4 + $0x6c] sm:$0xf]
          %v1915 = vld [vmem:[#allocation4 + $0x70] sm:$0xf]
          %v1916 = vld [vmem:[#allocation4 + $0x74] sm:$0xf]
          %v1917 = vld [vmem:[#allocation4 + $0x78] sm:$0xf]
          %v1918 = vld [vmem:[#allocation4 + $0x7c] sm:$0xf]
          %v1935 = vunpack.c.l.b16 %v289
          %v1936 = vunpack.c.h.b16 %v289
          %v1937 = vunpack.c.l.b16 %v290
          %v1938 = vunpack.c.h.b16 %v290
          %v1939 = vunpack.c.l.b16 %v291
          %v1940 = vunpack.c.h.b16 %v291
          %v1941 = vunpack.c.l.b16 %v292
          %v1942 = vunpack.c.h.b16 %v292
          %v1943 = vunpack.c.l.b16 %v293
          %v1944 = vunpack.c.h.b16 %v293
          %v1945 = vunpack.c.l.b16 %v294
          %v1946 = vunpack.c.h.b16 %v294
          %v1947 = vunpack.c.l.b16 %v295
          %v1948 = vunpack.c.h.b16 %v295
          %v1949 = vunpack.c.l.b16 %v296
          %v1950 = vunpack.c.h.b16 %v296
          %v1951 = vunpack.c.l.b16 %v297
          %v1952 = vunpack.c.h.b16 %v297
          %v1953 = vunpack.c.l.b16 %v298
          %v1954 = vunpack.c.h.b16 %v298
          %v1955 = vunpack.c.l.b16 %v299
          %v1956 = vunpack.c.h.b16 %v299
          %v1957 = vunpack.c.l.b16 %v300
          %v1958 = vunpack.c.h.b16 %v300
          %v1959 = vunpack.c.l.b16 %v301
          %v1960 = vunpack.c.h.b16 %v301
          %v1961 = vunpack.c.l.b16 %v302
          %v1962 = vunpack.c.h.b16 %v302
          %v1963 = vunpack.c.l.b16 %v303
          %v1964 = vunpack.c.h.b16 %v303
          %v1965 = vunpack.c.l.b16 %v304
          %v1966 = vunpack.c.h.b16 %v304
          %v1967 = vpack.c.b16 %v1937, %v1935
          %v1968 = vpack.c.b16 %v1938, %v1936
          %v1969 = vpack.c.b16 %v1941, %v1939
          %v1970 = vpack.c.b16 %v1942, %v1940
          %v1971 = vpack.c.b16 %v1945, %v1943
          %v1972 = vpack.c.b16 %v1946, %v1944
          %v1973 = vpack.c.b16 %v1949, %v1947
          %v1974 = vpack.c.b16 %v1950, %v1948
          %v1975 = vpack.c.b16 %v1953, %v1951
          %v1976 = vpack.c.b16 %v1954, %v1952
          %v1977 = vpack.c.b16 %v1957, %v1955
          %v1978 = vpack.c.b16 %v1958, %v1956
          %v1979 = vpack.c.b16 %v1961, %v1959
          %v1980 = vpack.c.b16 %v1962, %v1960
          %v1981 = vpack.c.b16 %v1965, %v1963
          %v1982 = vpack.c.b16 %v1966, %v1964
          %v2031 = vunpack.c.l.b16 %v1887
          %v2032 = vunpack.c.l.b16 %v1888
          %v2033 = vunpack.c.l.b16 %v1889
          %v2034 = vunpack.c.l.b16 %v1890
          %v2035 = vunpack.c.l.b16 %v1891
          %v2036 = vunpack.c.l.b16 %v1892
          %v2037 = vunpack.c.l.b16 %v1893
          %v2038 = vunpack.c.l.b16 %v1894
          %v2039 = vunpack.c.l.b16 %v1895
          %v2040 = vunpack.c.l.b16 %v1896
          %v2041 = vunpack.c.l.b16 %v1897
          %v2042 = vunpack.c.l.b16 %v1898
          %v2043 = vunpack.c.l.b16 %v1899
          %v2044 = vunpack.c.l.b16 %v1900
          %v2045 = vunpack.c.l.b16 %v1901
          %v2046 = vunpack.c.l.b16 %v1902
          %v2047 = vunpack.c.l.b16 %v1903
          %v2048 = vunpack.c.l.b16 %v1904
          %v2049 = vunpack.c.l.b16 %v1905
          %v2050 = vunpack.c.l.b16 %v1906
          %v2051 = vunpack.c.l.b16 %v1907
          %v2052 = vunpack.c.l.b16 %v1908
          %v2053 = vunpack.c.l.b16 %v1909
          %v2054 = vunpack.c.l.b16 %v1910
          %v2055 = vunpack.c.l.b16 %v1911
          %v2056 = vunpack.c.l.b16 %v1912
          %v2057 = vunpack.c.l.b16 %v1913
          %v2058 = vunpack.c.l.b16 %v1914
          %v2059 = vunpack.c.l.b16 %v1915
          %v2060 = vunpack.c.l.b16 %v1916
          %v2061 = vunpack.c.l.b16 %v1917
          %v2062 = vunpack.c.l.b16 %v1918
          %v2063 = vpack.c.b16 %v2032, %v2031
          %v2064 = vpack.c.b16 %v2034, %v2033
          %v2065 = vpack.c.b16 %v2036, %v2035
          %v2066 = vpack.c.b16 %v2038, %v2037
          %v2067 = vpack.c.b16 %v2040, %v2039
          %v2068 = vpack.c.b16 %v2042, %v2041
          %v2069 = vpack.c.b16 %v2044, %v2043
          %v2070 = vpack.c.b16 %v2046, %v2045
          %v2071 = vpack.c.b16 %v2048, %v2047
          %v2072 = vpack.c.b16 %v2050, %v2049
          %v2073 = vpack.c.b16 %v2052, %v2051
          %v2074 = vpack.c.b16 %v2054, %v2053
          %v2075 = vpack.c.b16 %v2056, %v2055
          %v2076 = vpack.c.b16 %v2058, %v2057
          %v2077 = vpack.c.b16 %v2060, %v2059
          %v2078 = vpack.c.b16 %v2062, %v2061
          %2095 = vmatprep.subr.bf16.mxu0 0
          %2096 = vmatpush1.bf16.msra.mxu0 %v2070
          %2097 = vmatprep.subr.bf16.mxu0 0
          %2098 = vmatpush1.bf16.msra.mxu0 %v2069
          %2099 = vmatprep.subr.bf16.mxu0 0
          %2100 = vmatpush1.bf16.msra.mxu0 %v2068
          %2101 = vmatprep.subr.bf16.mxu0 0
          %2102 = vmatpush1.bf16.msra.mxu0 %v2067
          %2103 = vmatprep.subr.bf16.mxu0 0
          %2104 = vmatpush1.bf16.msra.mxu0 %v2066
          %2105 = vmatprep.subr.bf16.mxu0 0
          %2106 = vmatpush1.bf16.msra.mxu0 %v2065
          %2107 = vmatprep.subr.bf16.mxu0 0
          %2108 = vmatpush1.bf16.msra.mxu0 %v2064
          %2109 = vmatprep.subr.bf16.mxu0 0
          %2110 = vmatpush1.bf16.msra.mxu0 %v2063
          %2111 = vmatprep.subr.bf16.mxu0 0
          %2112 = vmatpush2.bf16.msra.mxu0 %v2078
          %2113 = vmatprep.subr.bf16.mxu0 0
          %2114 = vmatpush2.bf16.msra.mxu0 %v2077
          %2115 = vmatprep.subr.bf16.mxu0 0
          %2116 = vmatpush2.bf16.msra.mxu0 %v2076
          %2117 = vmatprep.subr.bf16.mxu0 0
          %2118 = vmatpush2.bf16.msra.mxu0 %v2075
          %2119 = vmatprep.subr.bf16.mxu0 0
          %2120 = vmatpush2.bf16.msra.mxu0 %v2074
          %2121 = vmatprep.subr.bf16.mxu0 0
          %2122 = vmatpush2.bf16.msra.mxu0 %v2073
          %2123 = vmatprep.subr.bf16.mxu0 0
          %2124 = vmatpush2.bf16.msra.mxu0 %v2072
          %2125 = vmatprep.subr.bf16.mxu0 0
          %2126 = vmatpush2.bf16.msra.mxu0 %v2071
          %2127 = vmatprep.mubr.bf16.mxu0 %v1968
          %2128 = vmatmul.mubr.bf16.gmra.mxu0 %v1967
          %v2129 = vpop.f32.mrf.mxu0
          %v2130 = vadd.f32 0.0, %v2129
          %v2131 = vpop.f32.mrf.mxu0
          %v2132 = vpop.f32.mrf.mxu0
          %v2133 = vadd.f32 0.0, %v2132
          %v2134 = vpop.f32.mrf.mxu0
          %2135 = vmatprep.mubr.bf16.mxu0 %v1970
          %2136 = vmatmul.mubr.bf16.gmra.mxu0 %v1969
          %v2137 = vpop.f32.mrf.mxu0
          %v2138 = vadd.f32 0.0, %v2137
          %v2139 = vpop.f32.mrf.mxu0
          %v2140 = vpop.f32.mrf.mxu0
          %v2141 = vadd.f32 0.0, %v2140
          %v2142 = vpop.f32.mrf.mxu0
          %2143 = vmatprep.mubr.bf16.mxu0 %v1972
          %2144 = vmatmul.mubr.bf16.gmra.mxu0 %v1971
          %v2145 = vpop.f32.mrf.mxu0
          %v2146 = vadd.f32 0.0, %v2145
          %v2147 = vpop.f32.mrf.mxu0
          %v2148 = vpop.f32.mrf.mxu0
          %v2149 = vadd.f32 0.0, %v2148
          %v2150 = vpop.f32.mrf.mxu0
          %2151 = vmatprep.mubr.bf16.mxu0 %v1974
          %2152 = vmatmul.mubr.bf16.gmra.mxu0 %v1973
          %v2153 = vpop.f32.mrf.mxu0
          %v2154 = vadd.f32 0.0, %v2153
          %v2155 = vpop.f32.mrf.mxu0
          %v2156 = vpop.f32.mrf.mxu0
          %v2157 = vadd.f32 0.0, %v2156
          %v2158 = vpop.f32.mrf.mxu0
          %2159 = vmatprep.mubr.bf16.mxu0 %v1976
          %2160 = vmatmul.mubr.bf16.gmra.mxu0 %v1975
          %v2161 = vpop.f32.mrf.mxu0
          %v2162 = vadd.f32 0.0, %v2161
          %v2163 = vpop.f32.mrf.mxu0
          %v2164 = vpop.f32.mrf.mxu0
          %v2165 = vadd.f32 0.0, %v2164
          %v2166 = vpop.f32.mrf.mxu0
          %2167 = vmatprep.mubr.bf16.mxu0 %v1978
          %2168 = vmatmul.mubr.bf16.gmra.mxu0 %v1977
          %v2169 = vpop.f32.mrf.mxu0
          %v2170 = vadd.f32 0.0, %v2169
          %v2171 = vpop.f32.mrf.mxu0
          %v2172 = vpop.f32.mrf.mxu0
          %v2173 = vadd.f32 0.0, %v2172
          %v2174 = vpop.f32.mrf.mxu0
          %2175 = vmatprep.mubr.bf16.mxu0 %v1980
          %2176 = vmatmul.mubr.bf16.gmra.mxu0 %v1979
          %v2177 = vpop.f32.mrf.mxu0
          %v2178 = vadd.f32 0.0, %v2177
          %v2179 = vpop.f32.mrf.mxu0
          %v2180 = vpop.f32.mrf.mxu0
          %v2181 = vadd.f32 0.0, %v2180
          %v2182 = vpop.f32.mrf.mxu0
          %2183 = vmatprep.mubr.bf16.mxu0 %v1982
          %2184 = vmatmul.mubr.bf16.gmra.mxu0 %v1981
          %v2185 = vpop.f32.mrf.mxu0
          %v2186 = vadd.f32 0.0, %v2185
          %v2187 = vpop.f32.mrf.mxu0
          %v2188 = vpop.f32.mrf.mxu0
          %v2189 = vadd.f32 0.0, %v2188
          %v2190 = vpop.f32.mrf.mxu0
          %2191 = vdwg.mxu0
          %v2192 = vld [vmem:[%s4] sm:$0xf]
          %v2193 = vld [vmem:[%s4 + $0x4] sm:$0xf]
          %v2194 = vld [vmem:[%s4 + $0x8] sm:$0xf]
          %v2195 = vld [vmem:[%s4 + $0xc] sm:$0xf]
          %v2196 = vld [vmem:[%s4 + $0x10] sm:$0xf]
          %v2197 = vld [vmem:[%s4 + $0x14] sm:$0xf]
          %v2198 = vld [vmem:[%s4 + $0x18] sm:$0xf]
          %v2199 = vld [vmem:[%s4 + $0x1c] sm:$0xf]
          %v2200 = vld [vmem:[%s4 + $0x20] sm:$0xf]
          %v2201 = vld [vmem:[%s4 + $0x24] sm:$0xf]
          %v2202 = vld [vmem:[%s4 + $0x28] sm:$0xf]
          %v2203 = vld [vmem:[%s4 + $0x2c] sm:$0xf]
          %v2204 = vld [vmem:[%s4 + $0x30] sm:$0xf]
          %v2205 = vld [vmem:[%s4 + $0x34] sm:$0xf]
          %v2206 = vld [vmem:[%s4 + $0x38] sm:$0xf]
          %v2207 = vld [vmem:[%s4 + $0x3c] sm:$0xf]
          %v2208 = vpack.c.bf16 %v2133, %v2130
          %v2209 = vpack.c.bf16 %v2141, %v2138
          %v2210 = vpack.c.bf16 %v2149, %v2146
          %v2211 = vpack.c.bf16 %v2157, %v2154
          %v2212 = vpack.c.bf16 %v2165, %v2162
          %v2213 = vpack.c.bf16 %v2173, %v2170
          %v2214 = vpack.c.bf16 %v2181, %v2178
          %v2215 = vpack.c.bf16 %v2189, %v2186
          %v2216 = vld [vmem:[%s4 + $0x40] sm:$0xf]
          %v2217 = vld [vmem:[%s4 + $0x44] sm:$0xf]
          %v2218 = vld [vmem:[%s4 + $0x48] sm:$0xf]
          %v2219 = vld [vmem:[%s4 + $0x4c] sm:$0xf]
          %v2220 = vld [vmem:[%s4 + $0x50] sm:$0xf]
          %v2221 = vld [vmem:[%s4 + $0x54] sm:$0xf]
          %v2222 = vld [vmem:[%s4 + $0x58] sm:$0xf]
          %v2223 = vld [vmem:[%s4 + $0x5c] sm:$0xf]
          %v2224 = vld [vmem:[%s4 + $0x60] sm:$0xf]
          %v2225 = vld [vmem:[%s4 + $0x64] sm:$0xf]
          %v2226 = vld [vmem:[%s4 + $0x68] sm:$0xf]
          %v2227 = vld [vmem:[%s4 + $0x6c] sm:$0xf]
          %v2228 = vld [vmem:[%s4 + $0x70] sm:$0xf]
          %v2229 = vld [vmem:[%s4 + $0x74] sm:$0xf]
          %v2230 = vld [vmem:[%s4 + $0x78] sm:$0xf]
          %v2231 = vld [vmem:[%s4 + $0x7c] sm:$0xf]
          %v2248 = vunpack.c.l.b16 %v2216
          %v2249 = vunpack.c.l.b16 %v2217
          %v2250 = vunpack.c.l.b16 %v2218
          %v2251 = vunpack.c.l.b16 %v2219
          %v2252 = vunpack.c.l.b16 %v2220
          %v2253 = vunpack.c.l.b16 %v2221
          %v2254 = vunpack.c.l.b16 %v2222
          %v2255 = vunpack.c.l.b16 %v2223
          %v2256 = vunpack.c.l.b16 %v2224
          %v2257 = vunpack.c.l.b16 %v2225
          %v2258 = vunpack.c.l.b16 %v2226
          %v2259 = vunpack.c.l.b16 %v2227
          %v2260 = vunpack.c.l.b16 %v2228
          %v2261 = vunpack.c.l.b16 %v2229
          %v2262 = vunpack.c.l.b16 %v2230
          %v2263 = vunpack.c.l.b16 %v2231
          %v2264 = vpack.c.b16 %v2249, %v2248
          %v2265 = vpack.c.b16 %v2251, %v2250
          %v2266 = vpack.c.b16 %v2253, %v2252
          %v2267 = vpack.c.b16 %v2255, %v2254
          %v2268 = vpack.c.b16 %v2257, %v2256
          %v2269 = vpack.c.b16 %v2259, %v2258
          %v2270 = vpack.c.b16 %v2261, %v2260
          %v2271 = vpack.c.b16 %v2263, %v2262
          %2280 = vmatprep.subr.bf16.mxu0 0
          %2281 = vmatpush1.bf16.msra.mxu0 %v2271
          %2282 = vmatprep.subr.bf16.mxu0 0
          %2283 = vmatpush1.bf16.msra.mxu0 %v2270
          %2284 = vmatprep.subr.bf16.mxu0 0
          %2285 = vmatpush1.bf16.msra.mxu0 %v2269
          %2286 = vmatprep.subr.bf16.mxu0 0
          %2287 = vmatpush1.bf16.msra.mxu0 %v2268
          %2288 = vmatprep.subr.bf16.mxu0 0
          %2289 = vmatpush1.bf16.msra.mxu0 %v2267
          %2290 = vmatprep.subr.bf16.mxu0 0
          %2291 = vmatpush1.bf16.msra.mxu0 %v2266
          %2292 = vmatprep.subr.bf16.mxu0 0
          %2293 = vmatpush1.bf16.msra.mxu0 %v2265
          %2294 = vmatprep.subr.bf16.mxu0 0
          %2295 = vmatpush1.bf16.msra.mxu0 %v2264
          %2296 = vmatprep.subr.bf16.mxu0 0
          %2297 = vmatpush2.bf16.msra.mxu0 0
          %2298 = vmatprep.subr.bf16.mxu0 0
          %2299 = vmatpush2.bf16.msra.mxu0 0
          %2300 = vmatprep.subr.bf16.mxu0 0
          %2301 = vmatpush2.bf16.msra.mxu0 0
          %2302 = vmatprep.subr.bf16.mxu0 0
          %2303 = vmatpush2.bf16.msra.mxu0 0
          %2304 = vmatprep.subr.bf16.mxu0 0
          %2305 = vmatpush2.bf16.msra.mxu0 0
          %2306 = vmatprep.subr.bf16.mxu0 0
          %2307 = vmatpush2.bf16.msra.mxu0 0
          %2308 = vmatprep.subr.bf16.mxu0 0
          %2309 = vmatpush2.bf16.msra.mxu0 0
          %2310 = vmatprep.subr.bf16.mxu0 0
          %2311 = vmatpush2.bf16.msra.mxu0 0
          %2312 = vmatprep.mubr.bf16.mxu0 0
          %2313 = vmatmul.mubr.bf16.gmra.mxu0 %v2208
          %v2314 = vpop.f32.mrf.mxu0
          %v2315 = vadd.f32 0.0, %v2314
          %v2316 = vpop.f32.mrf.mxu0
          %v2317 = vpop.f32.mrf.mxu0
          %v2318 = vadd.f32 0.0, %v2317
          %v2319 = vpop.f32.mrf.mxu0
          %2320 = vmatprep.mubr.bf16.mxu0 0
          %2321 = vmatmul.mubr.bf16.gmra.mxu0 %v2209
          %v2322 = vpop.f32.mrf.mxu0
          %v2323 = vadd.f32 0.0, %v2322
          %v2324 = vpop.f32.mrf.mxu0
          %v2325 = vpop.f32.mrf.mxu0
          %v2326 = vadd.f32 0.0, %v2325
          %v2327 = vpop.f32.mrf.mxu0
          %2328 = vmatprep.mubr.bf16.mxu0 0
          %2329 = vmatmul.mubr.bf16.gmra.mxu0 %v2210
          %v2330 = vpop.f32.mrf.mxu0
          %v2331 = vadd.f32 0.0, %v2330
          %v2332 = vpop.f32.mrf.mxu0
          %v2333 = vpop.f32.mrf.mxu0
          %v2334 = vadd.f32 0.0, %v2333
          %v2335 = vpop.f32.mrf.mxu0
          %2336 = vmatprep.mubr.bf16.mxu0 0
          %2337 = vmatmul.mubr.bf16.gmra.mxu0 %v2211
          %v2338 = vpop.f32.mrf.mxu0
          %v2339 = vadd.f32 0.0, %v2338
          %v2340 = vpop.f32.mrf.mxu0
          %v2341 = vpop.f32.mrf.mxu0
          %v2342 = vadd.f32 0.0, %v2341
          %v2343 = vpop.f32.mrf.mxu0
          %2344 = vmatprep.mubr.bf16.mxu0 0
          %2345 = vmatmul.mubr.bf16.gmra.mxu0 %v2212
          %v2346 = vpop.f32.mrf.mxu0
          %v2347 = vadd.f32 0.0, %v2346
          %v2348 = vpop.f32.mrf.mxu0
          %v2349 = vpop.f32.mrf.mxu0
          %v2350 = vadd.f32 0.0, %v2349
          %v2351 = vpop.f32.mrf.mxu0
          %2352 = vmatprep.mubr.bf16.mxu0 0
          %2353 = vmatmul.mubr.bf16.gmra.mxu0 %v2213
          %v2354 = vpop.f32.mrf.mxu0
          %v2355 = vadd.f32 0.0, %v2354
          %v2356 = vpop.f32.mrf.mxu0
          %v2357 = vpop.f32.mrf.mxu0
          %v2358 = vadd.f32 0.0, %v2357
          %v2359 = vpop.f32.mrf.mxu0
          %2360 = vmatprep.mubr.bf16.mxu0 0
          %2361 = vmatmul.mubr.bf16.gmra.mxu0 %v2214
          %v2362 = vpop.f32.mrf.mxu0
          %v2363 = vadd.f32 0.0, %v2362
          %v2364 = vpop.f32.mrf.mxu0
          %v2365 = vpop.f32.mrf.mxu0
          %v2366 = vadd.f32 0.0, %v2365
          %v2367 = vpop.f32.mrf.mxu0
          %2368 = vmatprep.mubr.bf16.mxu0 0
          %2369 = vmatmul.mubr.bf16.gmra.mxu0 %v2215
          %v2370 = vpop.f32.mrf.mxu0
          %v2371 = vadd.f32 0.0, %v2370
          %v2372 = vpop.f32.mrf.mxu0
          %v2373 = vpop.f32.mrf.mxu0
          %v2374 = vadd.f32 0.0, %v2373
          %v2375 = vpop.f32.mrf.mxu0
          %2376 = vdwg.mxu0
          %v2393 = vunpack.c.l.b16 %v1871
          %v2394 = vunpack.c.l.b16 %v1872
          %v2395 = vunpack.c.l.b16 %v1873
          %v2396 = vunpack.c.l.b16 %v1874
          %v2397 = vunpack.c.l.b16 %v1875
          %v2398 = vunpack.c.l.b16 %v1876
          %v2399 = vunpack.c.l.b16 %v1877
          %v2400 = vunpack.c.l.b16 %v1878
          %v2401 = vunpack.c.l.b16 %v1879
          %v2402 = vunpack.c.l.b16 %v1880
          %v2403 = vunpack.c.l.b16 %v1881
          %v2404 = vunpack.c.l.b16 %v1882
          %v2405 = vunpack.c.l.b16 %v1883
          %v2406 = vunpack.c.l.b16 %v1884
          %v2407 = vunpack.c.l.b16 %v1885
          %v2408 = vunpack.c.l.b16 %v1886
          %v2409 = vpack.c.b16 %v2394, %v2393
          %v2410 = vpack.c.b16 %v2396, %v2395
          %v2411 = vpack.c.b16 %v2398, %v2397
          %v2412 = vpack.c.b16 %v2400, %v2399
          %v2413 = vpack.c.b16 %v2402, %v2401
          %v2414 = vpack.c.b16 %v2404, %v2403
          %v2415 = vpack.c.b16 %v2406, %v2405
          %v2416 = vpack.c.b16 %v2408, %v2407
          %v2441 = vunpack.c.l.b16 %v2192
          %v2442 = vunpack.c.l.b16 %v2193
          %v2443 = vunpack.c.l.b16 %v2194
          %v2444 = vunpack.c.l.b16 %v2195
          %v2445 = vunpack.c.l.b16 %v2196
          %v2446 = vunpack.c.l.b16 %v2197
          %v2447 = vunpack.c.l.b16 %v2198
          %v2448 = vunpack.c.l.b16 %v2199
          %v2449 = vunpack.c.l.b16 %v2200
          %v2450 = vunpack.c.l.b16 %v2201
          %v2451 = vunpack.c.l.b16 %v2202
          %v2452 = vunpack.c.l.b16 %v2203
          %v2453 = vunpack.c.l.b16 %v2204
          %v2454 = vunpack.c.l.b16 %v2205
          %v2455 = vunpack.c.l.b16 %v2206
          %v2456 = vunpack.c.l.b16 %v2207
          %v2457 = vpack.c.b16 %v2442, %v2441
          %v2458 = vpack.c.b16 %v2444, %v2443
          %v2459 = vpack.c.b16 %v2446, %v2445
          %v2460 = vpack.c.b16 %v2448, %v2447
          %v2461 = vpack.c.b16 %v2450, %v2449
          %v2462 = vpack.c.b16 %v2452, %v2451
          %v2463 = vpack.c.b16 %v2454, %v2453
          %v2464 = vpack.c.b16 %v2456, %v2455
          %2473 = vmatprep.subr.bf16.mxu0 0
          %2474 = vmatpush1.bf16.msra.mxu0 %v2464
          %2475 = vmatprep.subr.bf16.mxu0 0
          %2476 = vmatpush1.bf16.msra.mxu0 %v2463
          %2477 = vmatprep.subr.bf16.mxu0 0
          %2478 = vmatpush1.bf16.msra.mxu0 %v2462
          %2479 = vmatprep.subr.bf16.mxu0 0
          %2480 = vmatpush1.bf16.msra.mxu0 %v2461
          %2481 = vmatprep.subr.bf16.mxu0 0
          %2482 = vmatpush1.bf16.msra.mxu0 %v2460
          %2483 = vmatprep.subr.bf16.mxu0 0
          %2484 = vmatpush1.bf16.msra.mxu0 %v2459
          %2485 = vmatprep.subr.bf16.mxu0 0
          %2486 = vmatpush1.bf16.msra.mxu0 %v2458
          %2487 = vmatprep.subr.bf16.mxu0 0
          %2488 = vmatpush1.bf16.msra.mxu0 %v2457
          %2489 = vmatprep.subr.bf16.mxu0 0
          %2490 = vmatpush2.bf16.msra.mxu0 0
          %2491 = vmatprep.subr.bf16.mxu0 0
          %2492 = vmatpush2.bf16.msra.mxu0 0
          %2493 = vmatprep.subr.bf16.mxu0 0
          %2494 = vmatpush2.bf16.msra.mxu0 0
          %2495 = vmatprep.subr.bf16.mxu0 0
          %2496 = vmatpush2.bf16.msra.mxu0 0
          %2497 = vmatprep.subr.bf16.mxu0 0
          %2498 = vmatpush2.bf16.msra.mxu0 0
          %2499 = vmatprep.subr.bf16.mxu0 0
          %2500 = vmatpush2.bf16.msra.mxu0 0
          %2501 = vmatprep.subr.bf16.mxu0 0
          %2502 = vmatpush2.bf16.msra.mxu0 0
          %2503 = vmatprep.subr.bf16.mxu0 0
          %2504 = vmatpush2.bf16.msra.mxu0 0
          %2505 = vmatprep.mubr.bf16.mxu0 0
          %2506 = vmatmul.mubr.bf16.gmra.mxu0 %v2409
          %v2507 = vpop.f32.mrf.mxu0
          %v2508 = vadd.f32 %v2315, %v2507
          %v2509 = vpop.f32.mrf.mxu0
          %v2510 = vpop.f32.mrf.mxu0
          %v2511 = vadd.f32 %v2318, %v2510
          %v2512 = vpop.f32.mrf.mxu0
          %2513 = vmatprep.mubr.bf16.mxu0 0
          %2514 = vmatmul.mubr.bf16.gmra.mxu0 %v2410
          %v2515 = vpop.f32.mrf.mxu0
          %v2516 = vadd.f32 %v2323, %v2515
          %v2517 = vpop.f32.mrf.mxu0
          %v2518 = vpop.f32.mrf.mxu0
          %v2519 = vadd.f32 %v2326, %v2518
          %v2520 = vpop.f32.mrf.mxu0
          %2521 = vmatprep.mubr.bf16.mxu0 0
          %2522 = vmatmul.mubr.bf16.gmra.mxu0 %v2411
          %v2523 = vpop.f32.mrf.mxu0
          %v2524 = vadd.f32 %v2331, %v2523
          %v2525 = vpop.f32.mrf.mxu0
          %v2526 = vpop.f32.mrf.mxu0
          %v2527 = vadd.f32 %v2334, %v2526
          %v2528 = vpop.f32.mrf.mxu0
          %2529 = vmatprep.mubr.bf16.mxu0 0
          %2530 = vmatmul.mubr.bf16.gmra.mxu0 %v2412
          %v2531 = vpop.f32.mrf.mxu0
          %v2532 = vadd.f32 %v2339, %v2531
          %v2533 = vpop.f32.mrf.mxu0
          %v2534 = vpop.f32.mrf.mxu0
          %v2535 = vadd.f32 %v2342, %v2534
          %v2536 = vpop.f32.mrf.mxu0
          %2537 = vmatprep.mubr.bf16.mxu0 0
          %2538 = vmatmul.mubr.bf16.gmra.mxu0 %v2413
          %v2539 = vpop.f32.mrf.mxu0
          %v2540 = vadd.f32 %v2347, %v2539
          %v2541 = vpop.f32.mrf.mxu0
          %v2542 = vpop.f32.mrf.mxu0
          %v2543 = vadd.f32 %v2350, %v2542
          %v2544 = vpop.f32.mrf.mxu0
          %2545 = vmatprep.mubr.bf16.mxu0 0
          %2546 = vmatmul.mubr.bf16.gmra.mxu0 %v2414
          %v2547 = vpop.f32.mrf.mxu0
          %v2548 = vadd.f32 %v2355, %v2547
          %v2549 = vpop.f32.mrf.mxu0
          %v2550 = vpop.f32.mrf.mxu0
          %v2551 = vadd.f32 %v2358, %v2550
          %v2552 = vpop.f32.mrf.mxu0
          %2553 = vmatprep.mubr.bf16.mxu0 0
          %2554 = vmatmul.mubr.bf16.gmra.mxu0 %v2415
          %v2555 = vpop.f32.mrf.mxu0
          %v2556 = vadd.f32 %v2363, %v2555
          %v2557 = vpop.f32.mrf.mxu0
          %v2558 = vpop.f32.mrf.mxu0
          %v2559 = vadd.f32 %v2366, %v2558
          %v2560 = vpop.f32.mrf.mxu0
          %2561 = vmatprep.mubr.bf16.mxu0 0
          %2562 = vmatmul.mubr.bf16.gmra.mxu0 %v2416
          %v2563 = vpop.f32.mrf.mxu0
          %v2564 = vadd.f32 %v2371, %v2563
          %v2565 = vpop.f32.mrf.mxu0
          %v2566 = vpop.f32.mrf.mxu0
          %v2567 = vadd.f32 %v2374, %v2566
          %v2568 = vpop.f32.mrf.mxu0
          %2569 = vdwg.mxu0
          %v2570 = vld [vmem:[%s5] sm:$0x1]
          %v2572 = vlaneseq
          %v2573 = vshrl.u32 %v2572, 7
          %v2574 = vsub.s32 0, %v2573
          %v2575 = vrot.slane %v2570, %v2574
          %v2577 = vadd.f32 %v2508, %v2575
          %v2578 = vadd.f32 %v2511, %v2575
          %v2579 = vadd.f32 %v2516, %v2575
          %v2580 = vadd.f32 %v2519, %v2575
          %v2581 = vadd.f32 %v2524, %v2575
          %v2582 = vadd.f32 %v2527, %v2575
          %v2583 = vadd.f32 %v2532, %v2575
          %v2584 = vadd.f32 %v2535, %v2575
          %v2585 = vadd.f32 %v2540, %v2575
          %v2586 = vadd.f32 %v2543, %v2575
          %v2587 = vadd.f32 %v2548, %v2575
          %v2588 = vadd.f32 %v2551, %v2575
          %v2589 = vadd.f32 %v2556, %v2575
          %v2590 = vadd.f32 %v2559, %v2575
          %v2591 = vadd.f32 %v2564, %v2575
          %v2592 = vadd.f32 %v2567, %v2575
          %s2593 = scalar_lea.vmem [#allocation10], %s288
          %2594 = vst [vmem:[%s2593] sm:$0xff] %v2577
          %2595 = vst [vmem:[%s2593 + $0x8] sm:$0xff] %v2578
          %2596 = vst [vmem:[%s2593 + $0x10] sm:$0xff] %v2579
          %2597 = vst [vmem:[%s2593 + $0x18] sm:$0xff] %v2580
          %2598 = vst [vmem:[%s2593 + $0x20] sm:$0xff] %v2581
          %2599 = vst [vmem:[%s2593 + $0x28] sm:$0xff] %v2582
          %2600 = vst [vmem:[%s2593 + $0x30] sm:$0xff] %v2583
          %2601 = vst [vmem:[%s2593 + $0x38] sm:$0xff] %v2584
          %2602 = vst [vmem:[%s2593 + $0x40] sm:$0xff] %v2585
          %2603 = vst [vmem:[%s2593 + $0x48] sm:$0xff] %v2586
          %2604 = vst [vmem:[%s2593 + $0x50] sm:$0xff] %v2587
          %2605 = vst [vmem:[%s2593 + $0x58] sm:$0xff] %v2588
          %2606 = vst [vmem:[%s2593 + $0x60] sm:$0xff] %v2589
          %2607 = vst [vmem:[%s2593 + $0x68] sm:$0xff] %v2590
          %2608 = vst [vmem:[%s2593 + $0x70] sm:$0xff] %v2591
          %2609 = vst [vmem:[%s2593 + $0x78] sm:$0xff] %v2592
        $region68: #{_kipfnet_pallas.1} parent=43 // pred_fallthru
          _
        // Predicated region
        $region69: #{_kipfnet_pallas.1} parent=43 // pred_check
          %p2610 = pneg %p178
        $region70: #{_kipfnet_pallas.1} parent=43 // pred_check_branch
          %2612 = sbr.rel (%p2610) target = $region72
        $region71: #{_kipfnet_pallas.1} parent=43 // pred_region
          %s2614 = ssub.s32 4096, 4096
          %2615 = vsyncadd [#allocation7], %s2614
          %s2616 = sshll.u32 [#allocation10], 4
          %s2617 = int_to_ptr.vmem [resolvable:$true] %s2616
          %2622 = dma.vmem_to_hbm [thread:$0]  %s2617, 4096, %s6, [#allocation7], 128, 128, 8
        $region72: #{_kipfnet_pallas.1} parent=43 // pred_fallthru
          _
        // Predicated region
        $region73: #{_kipfnet_pallas.1} parent=43 // pred_check
          %p2623 = pneg %p178
        $region74: #{_kipfnet_pallas.1} parent=43 // pred_check_branch
          %2625 = sbr.rel (%p2623) target = $region76
        $region75: #{_kipfnet_pallas.1} parent=43 // pred_region
          %2626 = dma.done [#allocation7], 4096
        $region76: #{_kipfnet_pallas.1} parent=43 // pred_fallthru
          _
      $region44: #{_kipfnet_pallas.1} parent=5 // pred_fallthru
        _
      %p2627 = scmp.le.s32.totalorder 2, %s17
      // Predicated region
      $region77: #{_kipfnet_pallas.1} parent=5 // pred_check
        %p2628 = pneg %p2627
      $region78: #{_kipfnet_pallas.1} parent=5 // pred_check_branch
        %2630 = sbr.rel (%p2628) target = $region80
      $region79: #{_kipfnet_pallas.1} parent=5 // pred_region
        %s2631 = ssub.s32 %s17, 2
      $region80: #{_kipfnet_pallas.1} parent=5 // pred_fallthru
        _
    $region6: #{_kipfnet_pallas.1} parent=1 // loop_footer
      %s21 = sadd.s32 1, %s17
    $region7: #{_kipfnet_pallas.1} parent=1 // loop_footer_branch
      %16 = sbr.rel target = $region3
    $region8: #{_kipfnet_pallas.1} parent=1 // loop_exit
      _
    %2632 = vsyncpa [#allocation6], 1
    %s2633 = scalar_lea.sflag [#allocation6], 1
    %2634 = vsyncpa %s2633, 1
    %2635 = vsyncpa [#allocation9], 1
    %2636 = vsyncpa [#allocation7], 1
    %s2637 = scalar_lea.sflag [#allocation7], 1
    %2638 = vsyncpa %s2637, 1

</llo_original>
